<compile_context>
chip_gen: v7x
topology: tpu7x:2x2x1
jax: 0.10.0
libtpu: 0.0.40
codegen_flags: <defaults>
</compile_context>

<pallas_src>
import math

import jax
import jax.numpy as jnp
from jax.experimental import pallas as pl
from jax.experimental.pallas import tpu as pltpu


# -----------------------------------------------------------------------------
# In-kernel helpers (traced inside the fused kernel)
# -----------------------------------------------------------------------------
def _attention_pool(x, lens, W, b, w_s, b_s, *, num_tanh):
    """Batched masked attention pooling.

    x:    (N, S, H) f32   per-position features
    lens: (N, 1)    int32 valid length per sample
    W, b: (H, H), (1, H)  hidden projection (nn.Linear)
    w_s:  (1, H)          scalar-score projection weights (row vector)
    b_s:  (1, 1)          scalar-score bias (softmax is shift-invariant in it)
    Returns (N, H) f32 with tanh applied `num_tanh` times.
    """
    N, S, H = x.shape
    # Hidden projection as one big MXU matmul over all samples/positions.
    t = jnp.tanh(
        jnp.dot(x.reshape(N * S, H), W, preferred_element_type=jnp.float32) + b
    )                                                          # (N*S, H)
    # Per-position scalar attention logits.
    scores = jnp.sum(t.reshape(N, S, H) * w_s, axis=-1, keepdims=True) + b_s  # (N,S,1)
    # Mask positions >= length, then per-sample softmax over S.
    pos = jax.lax.broadcasted_iota(jnp.int32, (N, S, 1), 1)
    valid = pos < lens[:, :, None]                             # (N, S, 1)
    scores = jnp.where(valid, scores, -1e30)
    m = jnp.max(scores, axis=1, keepdims=True)                 # (N, 1, 1)
    e = jnp.where(valid, jnp.exp(scores - m), 0.0)             # (N, S, 1)
    denom = jnp.maximum(jnp.sum(e, axis=1, keepdims=True), 1e-30)   # len==0 guard
    attn = e * pl.reciprocal(denom, approx=True)               # (N, S, 1)  EUP
    pooled = jnp.sum(attn * x, axis=1)                         # (N, H)
    for _ in range(num_tanh):
        pooled = jnp.tanh(pooled)
    return pooled


def _cosine_sim(a, b):
    """Row-wise cosine similarity (B,H)x(B,H) -> (B,1); eps matches torch (1e-8)."""
    dot = jnp.sum(a * b, axis=-1, keepdims=True)
    na = jnp.sum(a * a, axis=-1, keepdims=True)
    nb = jnp.sum(b * b, axis=-1, keepdims=True)
    # 1 / max(||a||*||b||, 1e-8) == rsqrt(max(na*nb, 1e-16))  — EUP rsqrt
    return dot * jax.lax.rsqrt(jnp.maximum(na * nb, 1e-16))


def _make_fused_kernel(margin, batch):
    inv_b = 1.0 / float(batch)

    def kernel(node_len_ref, desc_len_ref, node_h_ref, desc_feat_ref,
               ast_W_ref, ast_b_ref, ast_sw_ref, ast_sb_ref,
               desc_W_ref, desc_b_ref, desc_sw_ref, desc_sb_ref,
               loss_ref, code_ref, desc_ref):
        # code_encoding: attention over tree-node hidden states, then tanh.
        code = _attention_pool(
            node_h_ref[...], node_len_ref[...],
            ast_W_ref[...], ast_b_ref[...], ast_sw_ref[...], ast_sb_ref[...],
            num_tanh=1)
        # desc_encoding (anchor & neg stacked on batch): masked attention,
        # then tanh applied twice (use_tanh + trailing tanh).
        desc = _attention_pool(
            desc_feat_ref[...], desc_len_ref[...],
            desc_W_ref[...], desc_b_ref[...], desc_sw_ref[...], desc_sb_ref[...],
            num_tanh=2)
        code_ref[...] = code
        desc_ref[...] = desc

        # Triplet margin ranking loss on the VMEM-resident representations.
        anchor = desc[:batch]
        neg = desc[batch:]
        anchor_sim = _cosine_sim(code, anchor)                 # (B, 1)
        neg_sim = _cosine_sim(code, neg)                       # (B, 1)
        loss_vec = jnp.maximum(margin - anchor_sim + neg_sim, 1e-6)
        loss_ref[...] = jnp.sum(loss_vec, axis=0, keepdims=True) * inv_b

    return kernel


# -----------------------------------------------------------------------------
# Forward wrapper: ONE pallas_call for the whole MultiEmbeder forward
# -----------------------------------------------------------------------------
def multi_embeder_forward(params, node_h, tree_node_num,
                          desc_anchor_feat, desc_anchor_len,
                          desc_neg_feat, desc_neg_len, margin):
    B, Sn, H = node_h.shape
    _, Sd, _ = desc_anchor_feat.shape

    # Anchor/neg descriptions share desc weights -> stack along batch so the
    # whole forward is one kernel launch and desc weights are loaded once.
    desc_feat = jnp.concatenate([desc_anchor_feat, desc_neg_feat], axis=0)
    desc_len = jnp.concatenate([desc_anchor_len, desc_neg_len], axis=0)

    node_len2 = tree_node_num.astype(jnp.int32).reshape(B, 1)
    desc_len2 = desc_len.astype(jnp.int32).reshape(2 * B, 1)

    vmem = pl.BlockSpec(memory_space=pltpu.MemorySpace.VMEM)   # whole-array block
    loss, code_repr, desc_repr = pl.pallas_call(
        _make_fused_kernel(float(margin), B),
        out_shape=(jax.ShapeDtypeStruct((1, 1), jnp.float32),        # loss
                   jax.ShapeDtypeStruct((B, H), jnp.float32),        # code repr
                   jax.ShapeDtypeStruct((2 * B, H), jnp.float32)),   # anchor|neg reprs
        in_specs=[vmem] * 12,
        out_specs=(vmem, vmem, vmem),
    )(node_len2, desc_len2, node_h, desc_feat,
      params["ast_attn_W"], params["ast_attn_b"],
      params["ast_attn_scalar_w"], params["ast_attn_scalar_b"],
      params["desc_attn_W"], params["desc_attn_b"],
      params["desc_attn_scalar_w"], params["desc_attn_scalar_b"])

    return loss[0, 0], code_repr, desc_repr[:B], desc_repr[B:]


# -----------------------------------------------------------------------------
# Pure-JAX reference (for correctness check only)
# -----------------------------------------------------------------------------
def ref_attention_pool(feat, lengths, W, b, w_s, b_s, num_tanh):
    t = jnp.tanh(feat @ W + b)                                  # (B, S, H)
    scores = jnp.einsum("bsh,h->bs", t, w_s[0]) + b_s[0, 0]
    mask = jnp.arange(feat.shape[1])[None, :] < lengths[:, None]
    scores = jnp.where(mask, scores, -jnp.inf)
    attn = jax.nn.softmax(scores, axis=1)
    pooled = jnp.einsum("bs,bsh->bh", attn, feat)
    for _ in range(num_tanh):
        pooled = jnp.tanh(pooled)
    return pooled


def ref_loss(code, anc, neg, margin):
    def cos(x, y):
        dot = jnp.sum(x * y, axis=1)
        return dot / jnp.maximum(
            jnp.linalg.norm(x, axis=1) * jnp.linalg.norm(y, axis=1), 1e-8)
    a = cos(code, anc)
    n = cos(code, neg)
    return jnp.mean(jnp.maximum(margin - a + n, 1e-6))


# -----------------------------------------------------------------------------
if __name__ == "__main__":
    key = jax.random.PRNGKey(0)
    B, S, N_NODES, H = 8, 8, 16, 32   # batch, desc seq len, max tree nodes, n_hidden
    MARGIN = 0.6

    ks = jax.random.split(key, 16)

    # Synthetic encoder outputs (TreeLSTM / SeqEncoder stand-ins, see TODO above)
    node_h = jax.random.normal(ks[0], (B, N_NODES, H), jnp.float32)
    tree_node_num = jnp.array([16, 5, 9, 16, 3, 12, 7, 11], jnp.int32)
    desc_anchor_feat = jax.random.normal(ks[1], (B, S, H), jnp.float32)
    desc_anchor_len = jnp.array([8, 3, 5, 8, 2, 6, 7, 4], jnp.int32)
    desc_neg_feat = jax.random.normal(ks[2], (B, S, H), jnp.float32)
    desc_neg_len = jnp.array([4, 8, 2, 6, 5, 8, 3, 7], jnp.int32)

    # Deterministic parameter init (matches nn.Linear shapes: H->H and H->1)
    def linear_init(k, fan_in, fan_out):
        kw, kb = jax.random.split(k)
        bound = 1.0 / math.sqrt(fan_in)
        W = jax.random.uniform(kw, (fan_in, fan_out), jnp.float32, -bound, bound)
        b = jax.random.uniform(kb, (1, fan_out), jnp.float32, -bound, bound)
        return W, b

    ast_W, ast_b = linear_init(ks[3], H, H)
    ast_sw, ast_sb = linear_init(ks[4], H, 1)      # (H,1), (1,1)
    desc_W, desc_b = linear_init(ks[5], H, H)
    desc_sw, desc_sb = linear_init(ks[6], H, 1)

    params = {
        "ast_attn_W": ast_W, "ast_attn_b": ast_b,
        "ast_attn_scalar_w": ast_sw.T,            # (1, H) row vector
        "ast_attn_scalar_b": ast_sb,              # (1, 1)
        "desc_attn_W": desc_W, "desc_attn_b": desc_b,
        "desc_attn_scalar_w": desc_sw.T,
        "desc_attn_scalar_b": desc_sb,
    }

    loss, code_repr, anc_repr, neg_repr = multi_embeder_forward(
        params, node_h, tree_node_num,
        desc_anchor_feat, desc_anchor_len,
        desc_neg_feat, desc_neg_len, MARGIN)
    jax.block_until_ready((loss, code_repr, anc_repr, neg_repr))

    # Correctness check against plain-JAX reference (tolerance accounts for the
    # EUP approximate reciprocal / rsqrt used inside the kernel).
    code_ref = ref_attention_pool(node_h, tree_node_num, ast_W, ast_b,
                                  ast_sw.T, ast_sb, 1)
    anc_ref = ref_attention_pool(desc_anchor_feat, desc_anchor_len, desc_W,
                                 desc_b, desc_sw.T, desc_sb, 2)
    neg_ref = ref_attention_pool(desc_neg_feat, desc_neg_len, desc_W,
                                 desc_b, desc_sw.T, desc_sb, 2)
    loss_ref = ref_loss(code_ref, anc_ref, neg_ref, MARGIN)

    assert jnp.allclose(code_repr, code_ref, atol=2e-3), "code_repr mismatch"
    assert jnp.allclose(anc_repr, anc_ref, atol=2e-3), "anchor_repr mismatch"
    assert jnp.allclose(neg_repr, neg_ref, atol=2e-3), "neg_repr mismatch"
    assert jnp.allclose(loss, loss_ref, atol=2e-3), "loss mismatch"

    print("KERNEL_OK")
</pallas_src>

<mosaic_0001>
module attributes {stable_mosaic.version = 11 : i64} {
  func.func @kernel(%arg0: memref<8x1xi32, #tpu.memory_space<vmem>>, %arg1: memref<16x1xi32, #tpu.memory_space<vmem>>, %arg2: memref<8x16x32xf32, #tpu.memory_space<vmem>>, %arg3: memref<16x8x32xf32, #tpu.memory_space<vmem>>, %arg4: memref<32x32xf32, #tpu.memory_space<vmem>>, %arg5: memref<1x32xf32, #tpu.memory_space<vmem>>, %arg6: memref<1x32xf32, #tpu.memory_space<vmem>>, %arg7: memref<1x1xf32, #tpu.memory_space<vmem>>, %arg8: memref<32x32xf32, #tpu.memory_space<vmem>>, %arg9: memref<1x32xf32, #tpu.memory_space<vmem>>, %arg10: memref<1x32xf32, #tpu.memory_space<vmem>>, %arg11: memref<1x1xf32, #tpu.memory_space<vmem>>, %arg12: memref<1x1xf32, #tpu.memory_space<vmem>>, %arg13: memref<8x32xf32, #tpu.memory_space<vmem>>, %arg14: memref<16x32xf32, #tpu.memory_space<vmem>>) attributes {dimension_semantics = [], scalar_prefetch = 0 : i64, scratch_operands = 0 : i64, tpu.core_type = #tpu.core_type<tc>} {
    %c0 = arith.constant 0 : index
    %c0_0 = arith.constant 0 : index
    %c0_1 = arith.constant 0 : index
    %0 = vector.load %arg2[%c0, %c0_0, %c0_1] : memref<8x16x32xf32, #tpu.memory_space<vmem>>, vector<8x16x32xf32>
    %c0_2 = arith.constant 0 : index
    %c0_3 = arith.constant 0 : index
    %1 = vector.load %arg0[%c0_2, %c0_3] : memref<8x1xi32, #tpu.memory_space<vmem>>, vector<8x1xi32>
    %c0_4 = arith.constant 0 : index
    %c0_5 = arith.constant 0 : index
    %2 = vector.load %arg4[%c0_4, %c0_5] : memref<32x32xf32, #tpu.memory_space<vmem>>, vector<32x32xf32>
    %c0_6 = arith.constant 0 : index
    %c0_7 = arith.constant 0 : index
    %3 = vector.load %arg5[%c0_6, %c0_7] : memref<1x32xf32, #tpu.memory_space<vmem>>, vector<1x32xf32>
    %c0_8 = arith.constant 0 : index
    %c0_9 = arith.constant 0 : index
    %4 = vector.load %arg6[%c0_8, %c0_9] : memref<1x32xf32, #tpu.memory_space<vmem>>, vector<1x32xf32>
    %c0_10 = arith.constant 0 : index
    %c0_11 = arith.constant 0 : index
    %5 = vector.load %arg7[%c0_10, %c0_11] : memref<1x1xf32, #tpu.memory_space<vmem>>, vector<1x1xf32>
    %6 = vector.shape_cast %0 : vector<8x16x32xf32> to vector<128x32xf32>
    %cst = arith.constant dense<0.000000e+00> : vector<128x32xf32>
    %7 = tpu.matmul %6, %2, %cst {dimension_numbers = #tpu.dot_dimension_numbers<[1], [0], [0], [1], [0, 0, 1, 1], [], []>} : vector<128x32xf32>, vector<32x32xf32>, vector<128x32xf32> -> vector<128x32xf32>
    %8 = vector.broadcast %3 : vector<1x32xf32> to vector<128x32xf32>
    %9 = arith.addf %7, %8 : vector<128x32xf32>
    %10 = math.tanh %9 : vector<128x32xf32>
    %11 = vector.shape_cast %10 : vector<128x32xf32> to vector<8x16x32xf32>
    %12 = vector.shape_cast %4 : vector<1x32xf32> to vector<1x1x32xf32>
    %13 = vector.broadcast %12 : vector<1x1x32xf32> to vector<8x16x32xf32>
    %14 = arith.mulf %11, %13 : vector<8x16x32xf32>
    %cst_12 = arith.constant dense<0.000000e+00> : vector<8x16xf32>
    %15 = vector.multi_reduction <add>, %14, %cst_12 [2] : vector<8x16x32xf32> to vector<8x16xf32>
    %16 = vector.shape_cast %15 : vector<8x16xf32> to vector<8x16x1xf32>
    %17 = vector.shape_cast %5 : vector<1x1xf32> to vector<1x1x1xf32>
    %18 = vector.broadcast %17 : vector<1x1x1xf32> to vector<8x16x1xf32>
    %19 = arith.addf %16, %18 : vector<8x16x1xf32>
    %20 = tpu.iota {dimensions = array<i32: 1>} : vector<8x16x1xi32>
    %21 = vector.shape_cast %1 : vector<8x1xi32> to vector<8x1x1xi32>
    %22 = vector.broadcast %21 : vector<8x1x1xi32> to vector<8x16x1xi32>
    %23 = arith.cmpi slt, %20, %22 : vector<8x16x1xi32>
    %cst_13 = arith.constant -1.000000e+30 : f32
    %24 = vector.broadcast %cst_13 : f32 to vector<8x16x1xf32>
    %25 = arith.select %23, %19, %24 : vector<8x16x1xi1>, vector<8x16x1xf32>
    %cst_14 = arith.constant dense<0xFF800000> : vector<8x1xf32>
    %26 = vector.multi_reduction <maximumf>, %25, %cst_14 [1] : vector<8x16x1xf32> to vector<8x1xf32>
    %27 = vector.shape_cast %26 : vector<8x1xf32> to vector<8x1x1xf32>
    %28 = vector.broadcast %27 : vector<8x1x1xf32> to vector<8x16x1xf32>
    %29 = arith.subf %25, %28 : vector<8x16x1xf32>
    %30 = math.exp %29 : vector<8x16x1xf32>
    %cst_15 = arith.constant 0.000000e+00 : f32
    %31 = vector.broadcast %cst_15 : f32 to vector<8x16x1xf32>
    %32 = arith.select %23, %30, %31 : vector<8x16x1xi1>, vector<8x16x1xf32>
    %cst_16 = arith.constant dense<0.000000e+00> : vector<8x1xf32>
    %33 = vector.multi_reduction <add>, %32, %cst_16 [1] : vector<8x16x1xf32> to vector<8x1xf32>
    %34 = vector.shape_cast %33 : vector<8x1xf32> to vector<8x1x1xf32>
    %cst_17 = arith.constant 1.000000e-30 : f32
    %35 = vector.broadcast %cst_17 : f32 to vector<8x1x1xf32>
    %36 = arith.maximumf %34, %35 : vector<8x1x1xf32>
    %37 = tpu.reciprocal %36 {approx = true} : vector<8x1x1xf32> -> vector<8x1x1xf32>
    %38 = vector.broadcast %37 : vector<8x1x1xf32> to vector<8x16x1xf32>
    %39 = arith.mulf %32, %38 : vector<8x16x1xf32>
    %40 = vector.broadcast %39 : vector<8x16x1xf32> to vector<8x16x32xf32>
    %41 = arith.mulf %40, %0 : vector<8x16x32xf32>
    %cst_18 = arith.constant dense<0.000000e+00> : vector<8x32xf32>
    %42 = vector.multi_reduction <add>, %41, %cst_18 [1] : vector<8x16x32xf32> to vector<8x32xf32>
    %43 = math.tanh %42 : vector<8x32xf32>
    %c0_19 = arith.constant 0 : index
    %c0_20 = arith.constant 0 : index
    %c0_21 = arith.constant 0 : index
    %44 = vector.load %arg3[%c0_19, %c0_20, %c0_21] : memref<16x8x32xf32, #tpu.memory_space<vmem>>, vector<16x8x32xf32>
    %c0_22 = arith.constant 0 : index
    %c0_23 = arith.constant 0 : index
    %45 = vector.load %arg1[%c0_22, %c0_23] : memref<16x1xi32, #tpu.memory_space<vmem>>, vector<16x1xi32>
    %c0_24 = arith.constant 0 : index
    %c0_25 = arith.constant 0 : index
    %46 = vector.load %arg8[%c0_24, %c0_25] : memref<32x32xf32, #tpu.memory_space<vmem>>, vector<32x32xf32>
    %c0_26 = arith.constant 0 : index
    %c0_27 = arith.constant 0 : index
    %47 = vector.load %arg9[%c0_26, %c0_27] : memref<1x32xf32, #tpu.memory_space<vmem>>, vector<1x32xf32>
    %c0_28 = arith.constant 0 : index
    %c0_29 = arith.constant 0 : index
    %48 = vector.load %arg10[%c0_28, %c0_29] : memref<1x32xf32, #tpu.memory_space<vmem>>, vector<1x32xf32>
    %c0_30 = arith.constant 0 : index
    %c0_31 = arith.constant 0 : index
    %49 = vector.load %arg11[%c0_30, %c0_31] : memref<1x1xf32, #tpu.memory_space<vmem>>, vector<1x1xf32>
    %50 = vector.shape_cast %44 : vector<16x8x32xf32> to vector<128x32xf32>
    %cst_32 = arith.constant dense<0.000000e+00> : vector<128x32xf32>
    %51 = tpu.matmul %50, %46, %cst_32 {dimension_numbers = #tpu.dot_dimension_numbers<[1], [0], [0], [1], [0, 0, 1, 1], [], []>} : vector<128x32xf32>, vector<32x32xf32>, vector<128x32xf32> -> vector<128x32xf32>
    %52 = vector.broadcast %47 : vector<1x32xf32> to vector<128x32xf32>
    %53 = arith.addf %51, %52 : vector<128x32xf32>
    %54 = math.tanh %53 : vector<128x32xf32>
    %55 = vector.shape_cast %54 : vector<128x32xf32> to vector<16x8x32xf32>
    %56 = vector.shape_cast %48 : vector<1x32xf32> to vector<1x1x32xf32>
    %57 = vector.broadcast %56 : vector<1x1x32xf32> to vector<16x8x32xf32>
    %58 = arith.mulf %55, %57 : vector<16x8x32xf32>
    %cst_33 = arith.constant dense<0.000000e+00> : vector<16x8xf32>
    %59 = vector.multi_reduction <add>, %58, %cst_33 [2] : vector<16x8x32xf32> to vector<16x8xf32>
    %60 = vector.shape_cast %59 : vector<16x8xf32> to vector<16x8x1xf32>
    %61 = vector.shape_cast %49 : vector<1x1xf32> to vector<1x1x1xf32>
    %62 = vector.broadcast %61 : vector<1x1x1xf32> to vector<16x8x1xf32>
    %63 = arith.addf %60, %62 : vector<16x8x1xf32>
    %64 = tpu.iota {dimensions = array<i32: 1>} : vector<16x8x1xi32>
    %65 = vector.shape_cast %45 : vector<16x1xi32> to vector<16x1x1xi32>
    %66 = vector.broadcast %65 : vector<16x1x1xi32> to vector<16x8x1xi32>
    %67 = arith.cmpi slt, %64, %66 : vector<16x8x1xi32>
    %cst_34 = arith.constant -1.000000e+30 : f32
    %68 = vector.broadcast %cst_34 : f32 to vector<16x8x1xf32>
    %69 = arith.select %67, %63, %68 : vector<16x8x1xi1>, vector<16x8x1xf32>
    %cst_35 = arith.constant dense<0xFF800000> : vector<16x1xf32>
    %70 = vector.multi_reduction <maximumf>, %69, %cst_35 [1] : vector<16x8x1xf32> to vector<16x1xf32>
    %71 = vector.shape_cast %70 : vector<16x1xf32> to vector<16x1x1xf32>
    %72 = vector.broadcast %71 : vector<16x1x1xf32> to vector<16x8x1xf32>
    %73 = arith.subf %69, %72 : vector<16x8x1xf32>
    %74 = math.exp %73 : vector<16x8x1xf32>
    %cst_36 = arith.constant 0.000000e+00 : f32
    %75 = vector.broadcast %cst_36 : f32 to vector<16x8x1xf32>
    %76 = arith.select %67, %74, %75 : vector<16x8x1xi1>, vector<16x8x1xf32>
    %cst_37 = arith.constant dense<0.000000e+00> : vector<16x1xf32>
    %77 = vector.multi_reduction <add>, %76, %cst_37 [1] : vector<16x8x1xf32> to vector<16x1xf32>
    %78 = vector.shape_cast %77 : vector<16x1xf32> to vector<16x1x1xf32>
    %cst_38 = arith.constant 1.000000e-30 : f32
    %79 = vector.broadcast %cst_38 : f32 to vector<16x1x1xf32>
    %80 = arith.maximumf %78, %79 : vector<16x1x1xf32>
    %81 = tpu.reciprocal %80 {approx = true} : vector<16x1x1xf32> -> vector<16x1x1xf32>
    %82 = vector.broadcast %81 : vector<16x1x1xf32> to vector<16x8x1xf32>
    %83 = arith.mulf %76, %82 : vector<16x8x1xf32>
    %84 = vector.broadcast %83 : vector<16x8x1xf32> to vector<16x8x32xf32>
    %85 = arith.mulf %84, %44 : vector<16x8x32xf32>
    %cst_39 = arith.constant dense<0.000000e+00> : vector<16x32xf32>
    %86 = vector.multi_reduction <add>, %85, %cst_39 [1] : vector<16x8x32xf32> to vector<16x32xf32>
    %87 = math.tanh %86 : vector<16x32xf32>
    %88 = math.tanh %87 : vector<16x32xf32>
    %c0_40 = arith.constant 0 : index
    %c0_41 = arith.constant 0 : index
    %89 = vector.load %arg13[%c0_40, %c0_41] : memref<8x32xf32, #tpu.memory_space<vmem>>, vector<8x32xf32>
    tpu.vector_store %arg13[%c0_40, %c0_41], %43 {strides = array<i32>} : memref<8x32xf32, #tpu.memory_space<vmem>>, vector<8x32xf32>,
    %c0_42 = arith.constant 0 : index
    %c0_43 = arith.constant 0 : index
    %90 = vector.load %arg14[%c0_42, %c0_43] : memref<16x32xf32, #tpu.memory_space<vmem>>, vector<16x32xf32>
    tpu.vector_store %arg14[%c0_42, %c0_43], %88 {strides = array<i32>} : memref<16x32xf32, #tpu.memory_space<vmem>>, vector<16x32xf32>,
    %91 = vector.extract_strided_slice %88 {offsets = [0, 0], sizes = [8, 32], strides = [1, 1]} : vector<16x32xf32> to vector<8x32xf32>
    %92 = vector.extract_strided_slice %88 {offsets = [8, 0], sizes = [8, 32], strides = [1, 1]} : vector<16x32xf32> to vector<8x32xf32>
    %93 = arith.mulf %43, %91 : vector<8x32xf32>
    %cst_44 = arith.constant dense<0.000000e+00> : vector<8xf32>
    %94 = vector.multi_reduction <add>, %93, %cst_44 [1] : vector<8x32xf32> to vector<8xf32>
    %95 = vector.shape_cast %94 : vector<8xf32> to vector<8x1xf32>
    %96 = arith.mulf %43, %43 : vector<8x32xf32>
    %cst_45 = arith.constant dense<0.000000e+00> : vector<8xf32>
    %97 = vector.multi_reduction <add>, %96, %cst_45 [1] : vector<8x32xf32> to vector<8xf32>
    %98 = vector.shape_cast %97 : vector<8xf32> to vector<8x1xf32>
    %99 = arith.mulf %91, %91 : vector<8x32xf32>
    %cst_46 = arith.constant dense<0.000000e+00> : vector<8xf32>
    %100 = vector.multi_reduction <add>, %99, %cst_46 [1] : vector<8x32xf32> to vector<8xf32>
    %101 = vector.shape_cast %100 : vector<8xf32> to vector<8x1xf32>
    %102 = arith.mulf %98, %101 : vector<8x1xf32>
    %cst_47 = arith.constant 1.000000e-16 : f32
    %103 = vector.broadcast %cst_47 : f32 to vector<8x1xf32>
    %104 = arith.maximumf %102, %103 : vector<8x1xf32>
    %105 = math.rsqrt %104 : vector<8x1xf32>
    %106 = arith.mulf %95, %105 : vector<8x1xf32>
    %107 = arith.mulf %43, %92 : vector<8x32xf32>
    %cst_48 = arith.constant dense<0.000000e+00> : vector<8xf32>
    %108 = vector.multi_reduction <add>, %107, %cst_48 [1] : vector<8x32xf32> to vector<8xf32>
    %109 = vector.shape_cast %108 : vector<8xf32> to vector<8x1xf32>
    %110 = arith.mulf %43, %43 : vector<8x32xf32>
    %cst_49 = arith.constant dense<0.000000e+00> : vector<8xf32>
    %111 = vector.multi_reduction <add>, %110, %cst_49 [1] : vector<8x32xf32> to vector<8xf32>
    %112 = vector.shape_cast %111 : vector<8xf32> to vector<8x1xf32>
    %113 = arith.mulf %92, %92 : vector<8x32xf32>
    %cst_50 = arith.constant dense<0.000000e+00> : vector<8xf32>
    %114 = vector.multi_reduction <add>, %113, %cst_50 [1] : vector<8x32xf32> to vector<8xf32>
    %115 = vector.shape_cast %114 : vector<8xf32> to vector<8x1xf32>
    %116 = arith.mulf %112, %115 : vector<8x1xf32>
    %cst_51 = arith.constant 1.000000e-16 : f32
    %117 = vector.broadcast %cst_51 : f32 to vector<8x1xf32>
    %118 = arith.maximumf %116, %117 : vector<8x1xf32>
    %119 = math.rsqrt %118 : vector<8x1xf32>
    %120 = arith.mulf %109, %119 : vector<8x1xf32>
    %cst_52 = arith.constant 6.000000e-01 : f32
    %121 = vector.broadcast %cst_52 : f32 to vector<8x1xf32>
    %122 = arith.subf %121, %106 : vector<8x1xf32>
    %123 = arith.addf %122, %120 : vector<8x1xf32>
    %cst_53 = arith.constant 9.99999997E-7 : f32
    %124 = vector.broadcast %cst_53 : f32 to vector<8x1xf32>
    %125 = arith.maximumf %123, %124 : vector<8x1xf32>
    %cst_54 = arith.constant dense<0.000000e+00> : vector<1xf32>
    %126 = vector.multi_reduction <add>, %125, %cst_54 [0] : vector<8x1xf32> to vector<1xf32>
    %127 = vector.shape_cast %126 : vector<1xf32> to vector<1x1xf32>
    %cst_55 = arith.constant 1.250000e-01 : f32
    %128 = vector.broadcast %cst_55 : f32 to vector<1x1xf32>
    %129 = arith.mulf %127, %128 : vector<1x1xf32>
    %c0_56 = arith.constant 0 : index
    %c0_57 = arith.constant 0 : index
    %130 = vector.load %arg12[%c0_56, %c0_57] : memref<1x1xf32, #tpu.memory_space<vmem>>, vector<1x1xf32>
    tpu.vector_store %arg12[%c0_56, %c0_57], %129 {strides = array<i32>} : memref<1x1xf32, #tpu.memory_space<vmem>>, vector<1x1xf32>,
    return
  }
}

</mosaic_0001>

<llo_original>
// kernel: tpu_custom_call.1
$region0: #{tpu_custom_call.1}
  #allocation0 [shape = 'u32[]', space=smem, size = 0x4, offset = 0x4, fixed_abs, tag = 'smem constant byte address 0x4 - core index']
  #allocation1 [shape = 'u32[144,128]{1,0:T(1,128)}', space=vmem, size = 0x12000, scoped, tag = 'internal scratch']
  #allocation2 [shape = 'f32[1,1]{1,0:T(1,128)S(1)}', space=vmem, size = 0x200, scoped, tag = 'scoped memory for tpu_custom_call.1']
  #allocation3 [shape = 'f32[1,1]{1,0:T(1,128)S(1)}', space=vmem, size = 0x200, scoped, tag = 'scoped memory for tpu_custom_call.1']
  %s0 = inlined_call_operand.vmem [shape: s32[8,1], index: 0, kind: input, shape index: {}]
  %s1 = inlined_call_operand.vmem [shape: s32[16,1], index: 1, kind: input, shape index: {}]
  %s2 = inlined_call_operand.hbm [shape: f32[8,16,32], index: 2, kind: input, shape index: {}]
  %s3 = inlined_call_operand.hbm [shape: f32[16,8,32], index: 3, kind: input, shape index: {}]
  %s4 = inlined_call_operand.vmem [shape: f32[32,32], index: 4, kind: input, shape index: {}]
  %s5 = inlined_call_operand.vmem [shape: f32[1,32], index: 5, kind: input, shape index: {}]
  %s6 = inlined_call_operand.vmem [shape: f32[1,32], index: 6, kind: input, shape index: {}]
  %s7 = inlined_call_operand.<no memory space> [shape: f32[1,1], index: 7, kind: input, shape index: {}]
  %s8 = inlined_call_operand.hbm [shape: f32[32,32], index: 8, kind: input, shape index: {}]
  %s9 = inlined_call_operand.vmem [shape: f32[1,32], index: 9, kind: input, shape index: {}]
  %s10 = inlined_call_operand.vmem [shape: f32[1,32], index: 10, kind: input, shape index: {}]
  %s11 = inlined_call_operand.<no memory space> [shape: f32[1,1], index: 11, kind: input, shape index: {}]
  %s12 = inlined_call_operand.hbm [shape: f32[1,1], index: 12, kind: output, shape index: {0}]
  %s13 = inlined_call_operand.hbm [shape: f32[8,32], index: 13, kind: output, shape index: {1}]
  %s14 = inlined_call_operand.hbm [shape: f32[16,32], index: 14, kind: output, shape index: {2}]
  %15 = xla_tuple %s12, %s13, %s14
  %s16 = sld [smem:[#allocation0]]
  $region86: #{tpu_custom_call.1} parent=0
    _
  %s18 = ssub.s32 1, %s16
  %s19 = scalar_select 0, %s18, %s16
  %v20 = vstv %s7
  %21 = vst [vmem:[#allocation2] sm:$0x1] %v20
  %v22 = vstv %s11
  %23 = vst [vmem:[#allocation3] sm:$0x1] %v22
  $region1: #{tpu_custom_call.1} parent=0
    #allocation4 [shape = 'u8[65536]{0}', space=vmem, size = 0x10000, scoped, tag = 'input window, operand 2, single buffered']
    #allocation5 [shape = 's32[1]{0}', space=sflag, size = 0x4, scoped, tag = 'scoped memory for tpu_custom_call.1']
    #allocation6 [shape = 's32[1]{0}', space=sflag, size = 0x4, scoped, tag = 'scoped memory for tpu_custom_call.1']
    #allocation7 [shape = 'u8[65536]{0}', space=vmem, size = 0x10000, scoped, tag = 'input window, operand 3, single buffered']
    #allocation8 [shape = 's32[1]{0}', space=sflag, size = 0x4, scoped, tag = 'scoped memory for tpu_custom_call.1']
    #allocation9 [shape = 'u8[16384]{0}', space=vmem, size = 0x4000, scoped, tag = 'input window, operand 8, single buffered']
    #allocation10 [shape = 'u8[512]{0}', space=vmem, size = 0x400, scoped, tag = 'output window, operand 0, single buffered']
    #allocation11 [shape = 'u8[4096]{0}', space=vmem, size = 0x1000, scoped, tag = 'output window, operand 1, single buffered']
    #allocation12 [shape = 's32[1]{0}', space=sflag, size = 0x4, scoped, tag = 'scoped memory for tpu_custom_call.1']
    #allocation13 [shape = 'u8[8192]{0}', space=vmem, size = 0x2000, scoped, tag = 'output window, operand 2, single buffered']
    %24 = vsyncpa [#allocation5], 0
    %25 = vsyncpa [#allocation8], 0
    %26 = vsyncpa [#allocation6], 0
    %27 = vsyncpa [#allocation12], 0
    // Predicated region
    $region2: #{tpu_custom_call.1} parent=1 // pred_check
      _
    $region3: #{tpu_custom_call.1} parent=1 // pred_check_branch
      %29 = sbr.rel (0) target = $region5
    $region4: #{tpu_custom_call.1} parent=1 // pred_region
      _
    $region5: #{tpu_custom_call.1} parent=1 // pred_fallthru
      _
    // Predicated region
    $region6: #{tpu_custom_call.1} parent=1 // pred_check
      _
    $region7: #{tpu_custom_call.1} parent=1 // pred_check_branch
      %31 = sbr.rel (0) target = $region9
    $region8: #{tpu_custom_call.1} parent=1 // pred_region
      _
    $region9: #{tpu_custom_call.1} parent=1 // pred_fallthru
      _
    // Predicated region
    $region10: #{tpu_custom_call.1} parent=1 // pred_check
      _
    $region11: #{tpu_custom_call.1} parent=1 // pred_check_branch
      %33 = sbr.rel (0) target = $region13
    $region12: #{tpu_custom_call.1} parent=1 // pred_region
      %s35 = ssub.s32 2048, 2048
      %36 = vsyncadd [#allocation5], %s35
      %s37 = sshll.u32 [#allocation4], 4
      %s38 = int_to_ptr.vmem [resolvable:$true] %s37
      %43 = dma.hbm_to_vmem [thread:$0]  %s2, 2048, %s38, [#allocation5], 128, 128, 8
    $region13: #{tpu_custom_call.1} parent=1 // pred_fallthru
      _
    // Predicated region
    $region14: #{tpu_custom_call.1} parent=1 // pred_check
      _
    $region15: #{tpu_custom_call.1} parent=1 // pred_check_branch
      %45 = sbr.rel (0) target = $region17
    $region16: #{tpu_custom_call.1} parent=1 // pred_region
      %s47 = ssub.s32 2048, 2048
      %48 = vsyncadd [#allocation8], %s47
      %s49 = sshll.u32 [#allocation7], 4
      %s50 = int_to_ptr.vmem [resolvable:$true] %s49
      %55 = dma.hbm_to_vmem [thread:$0]  %s3, 2048, %s50, [#allocation8], 128, 128, 8
    $region17: #{tpu_custom_call.1} parent=1 // pred_fallthru
      _
    // Predicated region
    $region18: #{tpu_custom_call.1} parent=1 // pred_check
      _
    $region19: #{tpu_custom_call.1} parent=1 // pred_check_branch
      %57 = sbr.rel (0) target = $region21
    $region20: #{tpu_custom_call.1} parent=1 // pred_region
      _
    $region21: #{tpu_custom_call.1} parent=1 // pred_fallthru
      _
    // Predicated region
    $region22: #{tpu_custom_call.1} parent=1 // pred_check
      _
    $region23: #{tpu_custom_call.1} parent=1 // pred_check_branch
      %59 = sbr.rel (0) target = $region25
    $region24: #{tpu_custom_call.1} parent=1 // pred_region
      _
    $region25: #{tpu_custom_call.1} parent=1 // pred_fallthru
      _
    // Predicated region
    $region26: #{tpu_custom_call.1} parent=1 // pred_check
      _
    $region27: #{tpu_custom_call.1} parent=1 // pred_check_branch
      %61 = sbr.rel (0) target = $region29
    $region28: #{tpu_custom_call.1} parent=1 // pred_region
      _
    $region29: #{tpu_custom_call.1} parent=1 // pred_fallthru
      _
    // Predicated region
    $region30: #{tpu_custom_call.1} parent=1 // pred_check
      _
    $region31: #{tpu_custom_call.1} parent=1 // pred_check_branch
      %63 = sbr.rel (0) target = $region33
    $region32: #{tpu_custom_call.1} parent=1 // pred_region
      _
    $region33: #{tpu_custom_call.1} parent=1 // pred_fallthru
      _
    // Predicated region
    $region34: #{tpu_custom_call.1} parent=1 // pred_check
      _
    $region35: #{tpu_custom_call.1} parent=1 // pred_check_branch
      %65 = sbr.rel (0) target = $region37
    $region36: #{tpu_custom_call.1} parent=1 // pred_region
      %s67 = ssub.s32 512, 512
      %68 = vsyncadd [#allocation8], %s67
      %s69 = sshll.u32 [#allocation9], 4
      %s70 = int_to_ptr.vmem [resolvable:$true] %s69
      %75 = dma.hbm_to_vmem [thread:$0]  %s8, 512, %s70, [#allocation8], 128, 128, 8
    $region37: #{tpu_custom_call.1} parent=1 // pred_fallthru
      _
    // Predicated region
    $region38: #{tpu_custom_call.1} parent=1 // pred_check
      _
    $region39: #{tpu_custom_call.1} parent=1 // pred_check_branch
      %77 = sbr.rel (0) target = $region41
    $region40: #{tpu_custom_call.1} parent=1 // pred_region
      _
    $region41: #{tpu_custom_call.1} parent=1 // pred_fallthru
      _
    // Predicated region
    $region42: #{tpu_custom_call.1} parent=1 // pred_check
      _
    $region43: #{tpu_custom_call.1} parent=1 // pred_check_branch
      %79 = sbr.rel (0) target = $region45
    $region44: #{tpu_custom_call.1} parent=1 // pred_region
      _
    $region45: #{tpu_custom_call.1} parent=1 // pred_fallthru
      _
    // Predicated region
    $region46: #{tpu_custom_call.1} parent=1 // pred_check
      _
    $region47: #{tpu_custom_call.1} parent=1 // pred_check_branch
      %81 = sbr.rel (0) target = $region49
    $region48: #{tpu_custom_call.1} parent=1 // pred_region
      _
    $region49: #{tpu_custom_call.1} parent=1 // pred_fallthru
      _
    // Predicated region
    $region50: #{tpu_custom_call.1} parent=1 // pred_check
      _
    $region51: #{tpu_custom_call.1} parent=1 // pred_check_branch
      %83 = sbr.rel (0) target = $region53
    $region52: #{tpu_custom_call.1} parent=1 // pred_region
      %84 = dma.done [#allocation5], 2048
    $region53: #{tpu_custom_call.1} parent=1 // pred_fallthru
      _
    // Predicated region
    $region54: #{tpu_custom_call.1} parent=1 // pred_check
      _
    $region55: #{tpu_custom_call.1} parent=1 // pred_check_branch
      %86 = sbr.rel (0) target = $region57
    $region56: #{tpu_custom_call.1} parent=1 // pred_region
      %87 = dma.done [#allocation8], 2048
    $region57: #{tpu_custom_call.1} parent=1 // pred_fallthru
      _
    // Predicated region
    $region58: #{tpu_custom_call.1} parent=1 // pred_check
      _
    $region59: #{tpu_custom_call.1} parent=1 // pred_check_branch
      %89 = sbr.rel (0) target = $region61
    $region60: #{tpu_custom_call.1} parent=1 // pred_region
      %90 = dma.done [#allocation8], 512
    $region61: #{tpu_custom_call.1} parent=1 // pred_fallthru
      _
    %v91 = vld [vmem:[#allocation4] sm:$0xff]
    %v92 = vld [vmem:[#allocation4 + $0x8] sm:$0xff]
    %v93 = vld [vmem:[#allocation4 + $0x10] sm:$0xff]
    %v94 = vld [vmem:[#allocation4 + $0x18] sm:$0xff]
    %v95 = vld [vmem:[#allocation4 + $0x20] sm:$0xff]
    %v96 = vld [vmem:[#allocation4 + $0x28] sm:$0xff]
    %v97 = vld [vmem:[#allocation4 + $0x30] sm:$0xff]
    %v98 = vld [vmem:[#allocation4 + $0x38] sm:$0xff]
    %v99 = vld [vmem:[#allocation4 + $0x40] sm:$0xff]
    %v100 = vld [vmem:[#allocation4 + $0x48] sm:$0xff]
    %v101 = vld [vmem:[#allocation4 + $0x50] sm:$0xff]
    %v102 = vld [vmem:[#allocation4 + $0x58] sm:$0xff]
    %v103 = vld [vmem:[#allocation4 + $0x60] sm:$0xff]
    %v104 = vld [vmem:[#allocation4 + $0x68] sm:$0xff]
    %v105 = vld [vmem:[#allocation4 + $0x70] sm:$0xff]
    %v106 = vld [vmem:[#allocation4 + $0x78] sm:$0xff]
    %v107 = vld [vmem:[%s0] sm:$0xff]
    %v108 = vld [vmem:[%s4] sm:$0xff]
    %v109 = vld [vmem:[%s4 + $0x8] sm:$0xff]
    %v110 = vld [vmem:[%s4 + $0x10] sm:$0xff]
    %v111 = vld [vmem:[%s4 + $0x18] sm:$0xff]
    %v112 = vld [vmem:[%s5] sm:$0x1]
    %v113 = vld [vmem:[%s6] sm:$0x1]
    %v114 = vld [vmem:[#allocation2] sm:$0x1]
    %v116 = vlaneseq
    %v117 = vshrl.u32 %v116, 7
    %v118 = vsub.s32 0, %v117
    %v119 = vrot.slane %v112, %v118
    %vm121 = vcmask 261120
    %v123 = vsel %vm121, %v91, 0
    %v126 = vsel %vm121, %v92, 0
    %v129 = vsel %vm121, %v93, 0
    %v132 = vsel %vm121, %v94, 0
    %v135 = vsel %vm121, %v95, 0
    %v138 = vsel %vm121, %v96, 0
    %v141 = vsel %vm121, %v97, 0
    %v144 = vsel %vm121, %v98, 0
    %v147 = vsel %vm121, %v99, 0
    %v150 = vsel %vm121, %v100, 0
    %v153 = vsel %vm121, %v101, 0
    %v156 = vsel %vm121, %v102, 0
    %v159 = vsel %vm121, %v103, 0
    %v162 = vsel %vm121, %v104, 0
    %v165 = vsel %vm121, %v105, 0
    %v168 = vsel %vm121, %v106, 0
    %170 = vmatprep.subr.mxu0 0.0
    %171 = vmatpush1.msra.mxu0 %v108
    %172 = vmatprep.subr.mxu0 0.0
    %173 = vmatpush1.msra.mxu0 %v109
    %174 = vmatprep.subr.mxu0 0.0
    %175 = vmatpush1.msra.mxu0 %v110
    %176 = vmatprep.subr.mxu0 0.0
    %177 = vmatpush1.msra.mxu0 %v111
    %178 = vmatprep.subr.mxu0 0.0
    %179 = vmatpush1.msra.mxu0 0.0
    %180 = vmatprep.subr.mxu0 0.0
    %181 = vmatpush1.msra.mxu0 0.0
    %182 = vmatprep.subr.mxu0 0.0
    %183 = vmatpush1.msra.mxu0 0.0
    %184 = vmatprep.subr.mxu0 0.0
    %185 = vmatpush1.msra.mxu0 0.0
    %186 = vmatprep.subr.mxu0 0.0
    %187 = vmatpush1.msra.mxu0 0.0
    %188 = vmatprep.subr.mxu0 0.0
    %189 = vmatpush1.msra.mxu0 0.0
    %190 = vmatprep.subr.mxu0 0.0
    %191 = vmatpush1.msra.mxu0 0.0
    %192 = vmatprep.subr.mxu0 0.0
    %193 = vmatpush1.msra.mxu0 0.0
    %194 = vmatprep.subr.mxu0 0.0
    %195 = vmatpush1.msra.mxu0 0.0
    %196 = vmatprep.subr.mxu0 0.0
    %197 = vmatpush1.msra.mxu0 0.0
    %198 = vmatprep.subr.mxu0 0.0
    %199 = vmatpush1.msra.mxu0 0.0
    %200 = vmatprep.subr.mxu0 0.0
    %201 = vmatpush1.msra.mxu0 0.0
    %202 = vmatprep.subr.mxu0 0.0
    %203 = vmatpush1.msra.mxu0 0.0
    %204 = vmatprep.subr.mxu0 0.0
    %205 = vmatpush1.msra.mxu0 0.0
    %206 = vmatprep.subr.mxu0 0.0
    %207 = vmatpush1.msra.mxu0 0.0
    %208 = vmatprep.subr.mxu0 0.0
    %209 = vmatpush1.msra.mxu0 0.0
    %210 = vmatprep.subr.mxu0 0.0
    %211 = vmatpush1.msra.mxu0 0.0
    %212 = vmatprep.subr.mxu0 0.0
    %213 = vmatpush1.msra.mxu0 0.0
    %214 = vmatprep.subr.mxu0 0.0
    %215 = vmatpush1.msra.mxu0 0.0
    %216 = vmatprep.subr.mxu0 0.0
    %217 = vmatpush1.msra.mxu0 0.0
    %218 = vmatprep.subr.mxu0 0.0
    %219 = vmatpush1.msra.mxu0 0.0
    %220 = vmatprep.subr.mxu0 0.0
    %221 = vmatpush1.msra.mxu0 0.0
    %222 = vmatprep.subr.mxu0 0.0
    %223 = vmatpush1.msra.mxu0 0.0
    %224 = vmatprep.subr.mxu0 0.0
    %225 = vmatpush1.msra.mxu0 0.0
    %226 = vmatprep.subr.mxu0 0.0
    %227 = vmatpush1.msra.mxu0 0.0
    %228 = vmatprep.subr.mxu0 0.0
    %229 = vmatpush1.msra.mxu0 0.0
    %230 = vmatprep.subr.mxu0 0.0
    %231 = vmatpush1.msra.mxu0 0.0
    %232 = vmatprep.subr.mxu0 0.0
    %233 = vmatpush1.msra.mxu0 0.0
    %234 = vmatprep.mubr.f32.mxu0 0.0
    %235 = vmatmul.mubr.f32.gmra.mrb[0].mxu0 %v123
    %v236 = vpop.f32.mrb[0].mxu0
    %v237 = vadd.f32 %v119, %v236
    %v238 = vpop.f32.mrb[0].mxu0
    %239 = vmatprep.mubr.f32.mxu0 0.0
    %240 = vmatmul.mubr.f32.gmra.mrb[0].mxu0 %v126
    %v241 = vpop.f32.mrb[0].mxu0
    %v242 = vadd.f32 %v119, %v241
    %v243 = vpop.f32.mrb[0].mxu0
    %244 = vmatprep.mubr.f32.mxu0 0.0
    %245 = vmatmul.mubr.f32.gmra.mrb[0].mxu0 %v129
    %v246 = vpop.f32.mrb[0].mxu0
    %v247 = vadd.f32 %v119, %v246
    %v248 = vpop.f32.mrb[0].mxu0
    %249 = vmatprep.mubr.f32.mxu0 0.0
    %250 = vmatmul.mubr.f32.gmra.mrb[0].mxu0 %v132
    %v251 = vpop.f32.mrb[0].mxu0
    %v252 = vadd.f32 %v119, %v251
    %v253 = vpop.f32.mrb[0].mxu0
    %254 = vmatprep.mubr.f32.mxu0 0.0
    %255 = vmatmul.mubr.f32.gmra.mrb[0].mxu0 %v135
    %v256 = vpop.f32.mrb[0].mxu0
    %v257 = vadd.f32 %v119, %v256
    %v258 = vpop.f32.mrb[0].mxu0
    %259 = vmatprep.mubr.f32.mxu0 0.0
    %260 = vmatmul.mubr.f32.gmra.mrb[0].mxu0 %v138
    %v261 = vpop.f32.mrb[0].mxu0
    %v262 = vadd.f32 %v119, %v261
    %v263 = vpop.f32.mrb[0].mxu0
    %264 = vmatprep.mubr.f32.mxu0 0.0
    %265 = vmatmul.mubr.f32.gmra.mrb[0].mxu0 %v141
    %v266 = vpop.f32.mrb[0].mxu0
    %v267 = vadd.f32 %v119, %v266
    %v268 = vpop.f32.mrb[0].mxu0
    %269 = vmatprep.mubr.f32.mxu0 0.0
    %270 = vmatmul.mubr.f32.gmra.mrb[0].mxu0 %v144
    %v271 = vpop.f32.mrb[0].mxu0
    %v272 = vadd.f32 %v119, %v271
    %v273 = vpop.f32.mrb[0].mxu0
    %274 = vmatprep.mubr.f32.mxu0 0.0
    %275 = vmatmul.mubr.f32.gmra.mrb[0].mxu0 %v147
    %v276 = vpop.f32.mrb[0].mxu0
    %v277 = vadd.f32 %v119, %v276
    %v278 = vpop.f32.mrb[0].mxu0
    %279 = vmatprep.mubr.f32.mxu0 0.0
    %280 = vmatmul.mubr.f32.gmra.mrb[0].mxu0 %v150
    %v281 = vpop.f32.mrb[0].mxu0
    %v282 = vadd.f32 %v119, %v281
    %v283 = vpop.f32.mrb[0].mxu0
    %284 = vmatprep.mubr.f32.mxu0 0.0
    %285 = vmatmul.mubr.f32.gmra.mrb[0].mxu0 %v153
    %v286 = vpop.f32.mrb[0].mxu0
    %v287 = vadd.f32 %v119, %v286
    %v288 = vpop.f32.mrb[0].mxu0
    %289 = vmatprep.mubr.f32.mxu0 0.0
    %290 = vmatmul.mubr.f32.gmra.mrb[0].mxu0 %v156
    %v291 = vpop.f32.mrb[0].mxu0
    %v292 = vadd.f32 %v119, %v291
    %v293 = vpop.f32.mrb[0].mxu0
    %294 = vmatprep.mubr.f32.mxu0 0.0
    %295 = vmatmul.mubr.f32.gmra.mrb[0].mxu0 %v159
    %v296 = vpop.f32.mrb[0].mxu0
    %v297 = vadd.f32 %v119, %v296
    %v298 = vpop.f32.mrb[0].mxu0
    %299 = vmatprep.mubr.f32.mxu0 0.0
    %300 = vmatmul.mubr.f32.gmra.mrb[0].mxu0 %v162
    %v301 = vpop.f32.mrb[0].mxu0
    %v302 = vadd.f32 %v119, %v301
    %v303 = vpop.f32.mrb[0].mxu0
    %304 = vmatprep.mubr.f32.mxu0 0.0
    %305 = vmatmul.mubr.f32.gmra.mrb[0].mxu0 %v165
    %v306 = vpop.f32.mrb[0].mxu0
    %v307 = vadd.f32 %v119, %v306
    %v308 = vpop.f32.mrb[0].mxu0
    %309 = vmatprep.mubr.f32.mxu0 0.0
    %310 = vmatmul.mubr.f32.gmra.mrb[0].mxu0 %v168
    %v311 = vpop.f32.mrb[0].mxu0
    %v312 = vadd.f32 %v119, %v311
    %v313 = vpop.f32.mrb[0].mxu0
    %314 = vdwg.mxu0
    %v315 = vtanh.pop %v237
    %v316 = vtanh.pop %v242
    %v317 = vtanh.pop %v247
    %v318 = vtanh.pop %v252
    %v319 = vtanh.pop %v257
    %v320 = vtanh.pop %v262
    %v321 = vtanh.pop %v267
    %v322 = vtanh.pop %v272
    %v323 = vtanh.pop %v277
    %v324 = vtanh.pop %v282
    %v325 = vtanh.pop %v287
    %v326 = vtanh.pop %v292
    %v327 = vtanh.pop %v297
    %v328 = vtanh.pop %v302
    %v329 = vtanh.pop %v307
    %v330 = vtanh.pop %v312
    %v332 = vlaneseq
    %v333 = vshrl.u32 %v332, 7
    %v334 = vsub.s32 0, %v333
    %v335 = vrot.slane %v113, %v334
    %v337 = vmul.f32 %v315, %v335
    %v338 = vmul.f32 %v316, %v335
    %v339 = vmul.f32 %v317, %v335
    %v340 = vmul.f32 %v318, %v335
    %v341 = vmul.f32 %v319, %v335
    %v342 = vmul.f32 %v320, %v335
    %v343 = vmul.f32 %v321, %v335
    %v344 = vmul.f32 %v322, %v335
    %v345 = vmul.f32 %v323, %v335
    %v346 = vmul.f32 %v324, %v335
    %v347 = vmul.f32 %v325, %v335
    %v348 = vmul.f32 %v326, %v335
    %v349 = vmul.f32 %v327, %v335
    %v350 = vmul.f32 %v328, %v335
    %v351 = vmul.f32 %v329, %v335
    %v352 = vmul.f32 %v330, %v335
    %v353 = vsel %vm121, %v337, 0.0
    %354 = vadd.xlane.f32.xlu0 %v353
    %v355 = vpop.xlane.xlu0 %354
    %v356 = vsel %vm121, %v338, 0.0
    %357 = vadd.xlane.f32.xlu0 %v356
    %v358 = vpop.xlane.xlu0 %357
    %v359 = vsel %vm121, %v339, 0.0
    %360 = vadd.xlane.f32.xlu0 %v359
    %v361 = vpop.xlane.xlu0 %360
    %v362 = vsel %vm121, %v340, 0.0
    %363 = vadd.xlane.f32.xlu0 %v362
    %v364 = vpop.xlane.xlu0 %363
    %v365 = vsel %vm121, %v341, 0.0
    %366 = vadd.xlane.f32.xlu0 %v365
    %v367 = vpop.xlane.xlu0 %366
    %v368 = vsel %vm121, %v342, 0.0
    %369 = vadd.xlane.f32.xlu0 %v368
    %v370 = vpop.xlane.xlu0 %369
    %v371 = vsel %vm121, %v343, 0.0
    %372 = vadd.xlane.f32.xlu0 %v371
    %v373 = vpop.xlane.xlu0 %372
    %v374 = vsel %vm121, %v344, 0.0
    %375 = vadd.xlane.f32.xlu0 %v374
    %v376 = vpop.xlane.xlu0 %375
    %v377 = vsel %vm121, %v345, 0.0
    %378 = vadd.xlane.f32.xlu0 %v377
    %v379 = vpop.xlane.xlu0 %378
    %v380 = vsel %vm121, %v346, 0.0
    %381 = vadd.xlane.f32.xlu0 %v380
    %v382 = vpop.xlane.xlu0 %381
    %v383 = vsel %vm121, %v347, 0.0
    %384 = vadd.xlane.f32.xlu0 %v383
    %v385 = vpop.xlane.xlu0 %384
    %v386 = vsel %vm121, %v348, 0.0
    %387 = vadd.xlane.f32.xlu0 %v386
    %v388 = vpop.xlane.xlu0 %387
    %v389 = vsel %vm121, %v349, 0.0
    %390 = vadd.xlane.f32.xlu0 %v389
    %v391 = vpop.xlane.xlu0 %390
    %v392 = vsel %vm121, %v350, 0.0
    %393 = vadd.xlane.f32.xlu0 %v392
    %v394 = vpop.xlane.xlu0 %393
    %v395 = vsel %vm121, %v351, 0.0
    %396 = vadd.xlane.f32.xlu0 %v395
    %v397 = vpop.xlane.xlu0 %396
    %v398 = vsel %vm121, %v352, 0.0
    %399 = vadd.xlane.f32.xlu0 %v398
    %v400 = vpop.xlane.xlu0 %399
    %v402 = vlaneseq
    %v403 = vshrl.u32 %v402, 7
    %v404 = vsub.s32 0, %v403
    %v405 = vrot.slane %v114, %v404
    %v407 = vadd.f32 %v355, %v405
    %v408 = vadd.f32 %v358, %v405
    %v409 = vadd.f32 %v361, %v405
    %v410 = vadd.f32 %v364, %v405
    %v411 = vadd.f32 %v367, %v405
    %v412 = vadd.f32 %v370, %v405
    %v413 = vadd.f32 %v373, %v405
    %v414 = vadd.f32 %v376, %v405
    %v415 = vadd.f32 %v379, %v405
    %v416 = vadd.f32 %v382, %v405
    %v417 = vadd.f32 %v385, %v405
    %v418 = vadd.f32 %v388, %v405
    %v419 = vadd.f32 %v391, %v405
    %v420 = vadd.f32 %v394, %v405
    %v421 = vadd.f32 %v397, %v405
    %v422 = vadd.f32 %v400, %v405
    %v423 = vlaneseq
    %v424 = vshrl.u32 %v423, 7
    %v425 = vadd.s32 %v424, 8
    %v426 = vcombine.high %v107, %v107
    %v428 = vunpack.c.l.s4 1966171168
    %v429 = vunpack.c.0.s8 %v428
    %v430 = vlaneseq
    %v431 = vshrl.u32 %v430, 7
    %v432 = vsub.s32 %v429, %v431
    %v433 = vrot.slane %v107, %v432
    %v435 = vunpack.c.l.s4 1966171168
    %v436 = vunpack.c.0.s8 %v435
    %v437 = vlaneseq
    %v438 = vshrl.u32 %v437, 7
    %v439 = vsub.s32 %v436, %v438
    %v440 = vrot.slane %v426, %v439
    %v441 = vcombine.high %v433, %v433
    %v442 = vcombine.high %v440, %v440
    %v444 = vunpack.c.l.s4 1966171168
    %v445 = vunpack.c.0.s8 %v444
    %v446 = vlaneseq
    %v447 = vshrl.u32 %v446, 7
    %v448 = vsub.s32 %v445, %v447
    %v449 = vrot.slane %v433, %v448
    %v451 = vunpack.c.l.s4 1966171168
    %v452 = vunpack.c.0.s8 %v451
    %v453 = vlaneseq
    %v454 = vshrl.u32 %v453, 7
    %v455 = vsub.s32 %v452, %v454
    %v456 = vrot.slane %v440, %v455
    %v458 = vunpack.c.l.s4 1966171168
    %v459 = vunpack.c.0.s8 %v458
    %v460 = vlaneseq
    %v461 = vshrl.u32 %v460, 7
    %v462 = vsub.s32 %v459, %v461
    %v463 = vrot.slane %v441, %v462
    %v465 = vunpack.c.l.s4 1966171168
    %v466 = vunpack.c.0.s8 %v465
    %v467 = vlaneseq
    %v468 = vshrl.u32 %v467, 7
    %v469 = vsub.s32 %v466, %v468
    %v470 = vrot.slane %v442, %v469
    %v471 = vcombine.high %v449, %v449
    %v472 = vcombine.high %v456, %v456
    %v473 = vcombine.high %v463, %v463
    %v474 = vcombine.high %v470, %v470
    %v475 = vlaneseq
    %v476 = vshrl.u32 %v475, 7
    %v477 = vsub.s32 0, %v476
    %v478 = vrot.slane %v449, %v477
    %v479 = vlaneseq
    %v480 = vshrl.u32 %v479, 7
    %v481 = vsub.s32 0, %v480
    %v482 = vrot.slane %v463, %v481
    %v483 = vlaneseq
    %v484 = vshrl.u32 %v483, 7
    %v485 = vsub.s32 0, %v484
    %v486 = vrot.slane %v471, %v485
    %v487 = vlaneseq
    %v488 = vshrl.u32 %v487, 7
    %v489 = vsub.s32 0, %v488
    %v490 = vrot.slane %v473, %v489
    %v491 = vlaneseq
    %v492 = vshrl.u32 %v491, 7
    %v493 = vsub.s32 0, %v492
    %v494 = vrot.slane %v456, %v493
    %v495 = vlaneseq
    %v496 = vshrl.u32 %v495, 7
    %v497 = vsub.s32 0, %v496
    %v498 = vrot.slane %v470, %v497
    %v499 = vlaneseq
    %v500 = vshrl.u32 %v499, 7
    %v501 = vsub.s32 0, %v500
    %v502 = vrot.slane %v472, %v501
    %v503 = vlaneseq
    %v504 = vshrl.u32 %v503, 7
    %v505 = vsub.s32 0, %v504
    %v506 = vrot.slane %v474, %v505
    %vm507 = vcmp.lt.s32.totalorder %v424, %v478
    %vm508 = vcmp.lt.s32.totalorder %v425, %v478
    %vm509 = vcmp.lt.s32.totalorder %v424, %v482
    %vm510 = vcmp.lt.s32.totalorder %v425, %v482
    %vm511 = vcmp.lt.s32.totalorder %v424, %v486
    %vm512 = vcmp.lt.s32.totalorder %v425, %v486
    %vm513 = vcmp.lt.s32.totalorder %v424, %v490
    %vm514 = vcmp.lt.s32.totalorder %v425, %v490
    %vm515 = vcmp.lt.s32.totalorder %v424, %v494
    %vm516 = vcmp.lt.s32.totalorder %v425, %v494
    %vm517 = vcmp.lt.s32.totalorder %v424, %v498
    %vm518 = vcmp.lt.s32.totalorder %v425, %v498
    %vm519 = vcmp.lt.s32.totalorder %v424, %v502
    %vm520 = vcmp.lt.s32.totalorder %v425, %v502
    %vm521 = vcmp.lt.s32.totalorder %v424, %v506
    %vm522 = vcmp.lt.s32.totalorder %v425, %v506
    %v523 = vsel %vm507, %v407, -1e+30
    %v524 = vsel %vm508, %v408, -1e+30
    %v525 = vsel %vm509, %v409, -1e+30
    %v526 = vsel %vm510, %v410, -1e+30
    %v527 = vsel %vm511, %v411, -1e+30
    %v528 = vsel %vm512, %v412, -1e+30
    %v529 = vsel %vm513, %v413, -1e+30
    %v530 = vsel %vm514, %v414, -1e+30
    %v531 = vsel %vm515, %v415, -1e+30
    %v532 = vsel %vm516, %v416, -1e+30
    %v533 = vsel %vm517, %v417, -1e+30
    %v534 = vsel %vm518, %v418, -1e+30
    %v535 = vsel %vm519, %v419, -1e+30
    %v536 = vsel %vm520, %v420, -1e+30
    %v537 = vsel %vm521, %v421, -1e+30
    %v538 = vsel %vm522, %v422, -1e+30
    %vm539 = vcmask 7168
    %v540 = vsel %vm539, %v523, -inf
    %v541 = vsel %vm539, %v524, -inf
    %v542 = vmax.f32 %v540, %v541
    %v543 = vrot.slane %v542, 4
    %v544 = vmax.f32 %v542, %v543
    %v545 = vrot.slane %v544, 2
    %v546 = vmax.f32 %v544, %v545
    %v547 = vrot.slane %v546, 1
    %v548 = vmax.f32 %v546, %v547
    %v549 = vsel %vm539, %v525, -inf
    %v550 = vsel %vm539, %v526, -inf
    %v551 = vmax.f32 %v549, %v550
    %v552 = vrot.slane %v551, 4
    %v553 = vmax.f32 %v551, %v552
    %v554 = vrot.slane %v553, 2
    %v555 = vmax.f32 %v553, %v554
    %v556 = vrot.slane %v555, 1
    %v557 = vmax.f32 %v555, %v556
    %v558 = vsel %vm539, %v527, -inf
    %v559 = vsel %vm539, %v528, -inf
    %v560 = vmax.f32 %v558, %v559
    %v561 = vrot.slane %v560, 4
    %v562 = vmax.f32 %v560, %v561
    %v563 = vrot.slane %v562, 2
    %v564 = vmax.f32 %v562, %v563
    %v565 = vrot.slane %v564, 1
    %v566 = vmax.f32 %v564, %v565
    %v567 = vsel %vm539, %v529, -inf
    %v568 = vsel %vm539, %v530, -inf
    %v569 = vmax.f32 %v567, %v568
    %v570 = vrot.slane %v569, 4
    %v571 = vmax.f32 %v569, %v570
    %v572 = vrot.slane %v571, 2
    %v573 = vmax.f32 %v571, %v572
    %v574 = vrot.slane %v573, 1
    %v575 = vmax.f32 %v573, %v574
    %v576 = vsel %vm539, %v531, -inf
    %v577 = vsel %vm539, %v532, -inf
    %v578 = vmax.f32 %v576, %v577
    %v579 = vrot.slane %v578, 4
    %v580 = vmax.f32 %v578, %v579
    %v581 = vrot.slane %v580, 2
    %v582 = vmax.f32 %v580, %v581
    %v583 = vrot.slane %v582, 1
    %v584 = vmax.f32 %v582, %v583
    %v585 = vsel %vm539, %v533, -inf
    %v586 = vsel %vm539, %v534, -inf
    %v587 = vmax.f32 %v585, %v586
    %v588 = vrot.slane %v587, 4
    %v589 = vmax.f32 %v587, %v588
    %v590 = vrot.slane %v589, 2
    %v591 = vmax.f32 %v589, %v590
    %v592 = vrot.slane %v591, 1
    %v593 = vmax.f32 %v591, %v592
    %v594 = vsel %vm539, %v535, -inf
    %v595 = vsel %vm539, %v536, -inf
    %v596 = vmax.f32 %v594, %v595
    %v597 = vrot.slane %v596, 4
    %v598 = vmax.f32 %v596, %v597
    %v599 = vrot.slane %v598, 2
    %v600 = vmax.f32 %v598, %v599
    %v601 = vrot.slane %v600, 1
    %v602 = vmax.f32 %v600, %v601
    %v603 = vsel %vm539, %v537, -inf
    %v604 = vsel %vm539, %v538, -inf
    %v605 = vmax.f32 %v603, %v604
    %v606 = vrot.slane %v605, 4
    %v607 = vmax.f32 %v605, %v606
    %v608 = vrot.slane %v607, 2
    %v609 = vmax.f32 %v607, %v608
    %v610 = vrot.slane %v609, 1
    %v611 = vmax.f32 %v609, %v610
    %v612 = vsub.f32 %v523, %v548
    %v613 = vsub.f32 %v524, %v548
    %v614 = vsub.f32 %v525, %v557
    %v615 = vsub.f32 %v526, %v557
    %v616 = vsub.f32 %v527, %v566
    %v617 = vsub.f32 %v528, %v566
    %v618 = vsub.f32 %v529, %v575
    %v619 = vsub.f32 %v530, %v575
    %v620 = vsub.f32 %v531, %v584
    %v621 = vsub.f32 %v532, %v584
    %v622 = vsub.f32 %v533, %v593
    %v623 = vsub.f32 %v534, %v593
    %v624 = vsub.f32 %v535, %v602
    %v625 = vsub.f32 %v536, %v602
    %v626 = vsub.f32 %v537, %v611
    %v627 = vsub.f32 %v538, %v611
    %v628 = vmul.f32 %v612, 1.442695
    %v629 = vpow.pop %v628
    %v630 = vmul.f32 %v613, 1.442695
    %v631 = vpow.pop %v630
    %v632 = vmul.f32 %v614, 1.442695
    %v633 = vpow.pop %v632
    %v634 = vmul.f32 %v615, 1.442695
    %v635 = vpow.pop %v634
    %v636 = vmul.f32 %v616, 1.442695
    %v637 = vpow.pop %v636
    %v638 = vmul.f32 %v617, 1.442695
    %v639 = vpow.pop %v638
    %v640 = vmul.f32 %v618, 1.442695
    %v641 = vpow.pop %v640
    %v642 = vmul.f32 %v619, 1.442695
    %v643 = vpow.pop %v642
    %v644 = vmul.f32 %v620, 1.442695
    %v645 = vpow.pop %v644
    %v646 = vmul.f32 %v621, 1.442695
    %v647 = vpow.pop %v646
    %v648 = vmul.f32 %v622, 1.442695
    %v649 = vpow.pop %v648
    %v650 = vmul.f32 %v623, 1.442695
    %v651 = vpow.pop %v650
    %v652 = vmul.f32 %v624, 1.442695
    %v653 = vpow.pop %v652
    %v654 = vmul.f32 %v625, 1.442695
    %v655 = vpow.pop %v654
    %v656 = vmul.f32 %v626, 1.442695
    %v657 = vpow.pop %v656
    %v658 = vmul.f32 %v627, 1.442695
    %v659 = vpow.pop %v658
    %v660 = vsel %vm507, %v629, 0.0
    %v661 = vsel %vm508, %v631, 0.0
    %v662 = vsel %vm509, %v633, 0.0
    %v663 = vsel %vm510, %v635, 0.0
    %v664 = vsel %vm511, %v637, 0.0
    %v665 = vsel %vm512, %v639, 0.0
    %v666 = vsel %vm513, %v641, 0.0
    %v667 = vsel %vm514, %v643, 0.0
    %v668 = vsel %vm515, %v645, 0.0
    %v669 = vsel %vm516, %v647, 0.0
    %v670 = vsel %vm517, %v649, 0.0
    %v671 = vsel %vm518, %v651, 0.0
    %v672 = vsel %vm519, %v653, 0.0
    %v673 = vsel %vm520, %v655, 0.0
    %v674 = vsel %vm521, %v657, 0.0
    %v675 = vsel %vm522, %v659, 0.0
    %v676 = vsel %vm539, %v660, 0.0
    %v677 = vsel %vm539, %v661, 0.0
    %v678 = vadd.f32 %v676, %v677
    %v679 = vrot.slane %v678, 4
    %v680 = vadd.f32 %v678, %v679
    %v681 = vrot.slane %v680, 2
    %v682 = vadd.f32 %v680, %v681
    %v683 = vrot.slane %v682, 1
    %v684 = vadd.f32 %v682, %v683
    %v685 = vsel %vm539, %v662, 0.0
    %v686 = vsel %vm539, %v663, 0.0
    %v687 = vadd.f32 %v685, %v686
    %v688 = vrot.slane %v687, 4
    %v689 = vadd.f32 %v687, %v688
    %v690 = vrot.slane %v689, 2
    %v691 = vadd.f32 %v689, %v690
    %v692 = vrot.slane %v691, 1
    %v693 = vadd.f32 %v691, %v692
    %v694 = vsel %vm539, %v664, 0.0
    %v695 = vsel %vm539, %v665, 0.0
    %v696 = vadd.f32 %v694, %v695
    %v697 = vrot.slane %v696, 4
    %v698 = vadd.f32 %v696, %v697
    %v699 = vrot.slane %v698, 2
    %v700 = vadd.f32 %v698, %v699
    %v701 = vrot.slane %v700, 1
    %v702 = vadd.f32 %v700, %v701
    %v703 = vsel %vm539, %v666, 0.0
    %v704 = vsel %vm539, %v667, 0.0
    %v705 = vadd.f32 %v703, %v704
    %v706 = vrot.slane %v705, 4
    %v707 = vadd.f32 %v705, %v706
    %v708 = vrot.slane %v707, 2
    %v709 = vadd.f32 %v707, %v708
    %v710 = vrot.slane %v709, 1
    %v711 = vadd.f32 %v709, %v710
    %v712 = vsel %vm539, %v668, 0.0
    %v713 = vsel %vm539, %v669, 0.0
    %v714 = vadd.f32 %v712, %v713
    %v715 = vrot.slane %v714, 4
    %v716 = vadd.f32 %v714, %v715
    %v717 = vrot.slane %v716, 2
    %v718 = vadd.f32 %v716, %v717
    %v719 = vrot.slane %v718, 1
    %v720 = vadd.f32 %v718, %v719
    %v721 = vsel %vm539, %v670, 0.0
    %v722 = vsel %vm539, %v671, 0.0
    %v723 = vadd.f32 %v721, %v722
    %v724 = vrot.slane %v723, 4
    %v725 = vadd.f32 %v723, %v724
    %v726 = vrot.slane %v725, 2
    %v727 = vadd.f32 %v725, %v726
    %v728 = vrot.slane %v727, 1
    %v729 = vadd.f32 %v727, %v728
    %v730 = vsel %vm539, %v672, 0.0
    %v731 = vsel %vm539, %v673, 0.0
    %v732 = vadd.f32 %v730, %v731
    %v733 = vrot.slane %v732, 4
    %v734 = vadd.f32 %v732, %v733
    %v735 = vrot.slane %v734, 2
    %v736 = vadd.f32 %v734, %v735
    %v737 = vrot.slane %v736, 1
    %v738 = vadd.f32 %v736, %v737
    %v739 = vsel %vm539, %v674, 0.0
    %v740 = vsel %vm539, %v675, 0.0
    %v741 = vadd.f32 %v739, %v740
    %v742 = vrot.slane %v741, 4
    %v743 = vadd.f32 %v741, %v742
    %v744 = vrot.slane %v743, 2
    %v745 = vadd.f32 %v743, %v744
    %v746 = vrot.slane %v745, 1
    %v747 = vadd.f32 %v745, %v746
    %v748 = vmax.f32 %v684, 1e-30
    %v749 = vmax.f32 %v693, 1e-30
    %v750 = vmax.f32 %v702, 1e-30
    %v751 = vmax.f32 %v711, 1e-30
    %v752 = vmax.f32 %v720, 1e-30
    %v753 = vmax.f32 %v729, 1e-30
    %v754 = vmax.f32 %v738, 1e-30
    %v755 = vmax.f32 %v747, 1e-30
    %v756 = vrcp.pop %v748
    %v757 = vrcp.pop %v749
    %v758 = vrcp.pop %v750
    %v759 = vrcp.pop %v751
    %v760 = vrcp.pop %v752
    %v761 = vrcp.pop %v753
    %v762 = vrcp.pop %v754
    %v763 = vrcp.pop %v755
    %v764 = vmul.f32 %v660, %v756
    %v765 = vmul.f32 %v661, %v756
    %v766 = vmul.f32 %v662, %v757
    %v767 = vmul.f32 %v663, %v757
    %v768 = vmul.f32 %v664, %v758
    %v769 = vmul.f32 %v665, %v758
    %v770 = vmul.f32 %v666, %v759
    %v771 = vmul.f32 %v667, %v759
    %v772 = vmul.f32 %v668, %v760
    %v773 = vmul.f32 %v669, %v760
    %v774 = vmul.f32 %v670, %v761
    %v775 = vmul.f32 %v671, %v761
    %v776 = vmul.f32 %v672, %v762
    %v777 = vmul.f32 %v673, %v762
    %v778 = vmul.f32 %v674, %v763
    %v779 = vmul.f32 %v675, %v763
    %781 = vset.pattern.permute.xlu0 0
    %782 = vperm.xlu0 %781, %v764
    %v783 = vpop.permute.xlu0 %782
    %786 = vset.pattern.permute.xlu0 0
    %787 = vperm.xlu0 %786, %v765
    %v788 = vpop.permute.xlu0 %787
    %791 = vset.pattern.permute.xlu0 0
    %792 = vperm.xlu0 %791, %v766
    %v793 = vpop.permute.xlu0 %792
    %796 = vset.pattern.permute.xlu0 0
    %797 = vperm.xlu0 %796, %v767
    %v798 = vpop.permute.xlu0 %797
    %801 = vset.pattern.permute.xlu0 0
    %802 = vperm.xlu0 %801, %v768
    %v803 = vpop.permute.xlu0 %802
    %806 = vset.pattern.permute.xlu0 0
    %807 = vperm.xlu0 %806, %v769
    %v808 = vpop.permute.xlu0 %807
    %811 = vset.pattern.permute.xlu0 0
    %812 = vperm.xlu0 %811, %v770
    %v813 = vpop.permute.xlu0 %812
    %816 = vset.pattern.permute.xlu0 0
    %817 = vperm.xlu0 %816, %v771
    %v818 = vpop.permute.xlu0 %817
    %821 = vset.pattern.permute.xlu0 0
    %822 = vperm.xlu0 %821, %v772
    %v823 = vpop.permute.xlu0 %822
    %826 = vset.pattern.permute.xlu0 0
    %827 = vperm.xlu0 %826, %v773
    %v828 = vpop.permute.xlu0 %827
    %831 = vset.pattern.permute.xlu0 0
    %832 = vperm.xlu0 %831, %v774
    %v833 = vpop.permute.xlu0 %832
    %836 = vset.pattern.permute.xlu0 0
    %837 = vperm.xlu0 %836, %v775
    %v838 = vpop.permute.xlu0 %837
    %841 = vset.pattern.permute.xlu0 0
    %842 = vperm.xlu0 %841, %v776
    %v843 = vpop.permute.xlu0 %842
    %846 = vset.pattern.permute.xlu0 0
    %847 = vperm.xlu0 %846, %v777
    %v848 = vpop.permute.xlu0 %847
    %851 = vset.pattern.permute.xlu0 0
    %852 = vperm.xlu0 %851, %v778
    %v853 = vpop.permute.xlu0 %852
    %856 = vset.pattern.permute.xlu0 0
    %857 = vperm.xlu0 %856, %v779
    %v858 = vpop.permute.xlu0 %857
    %v860 = vmul.f32 %v783, %v91
    %v861 = vmul.f32 %v788, %v92
    %v862 = vmul.f32 %v793, %v93
    %v863 = vmul.f32 %v798, %v94
    %v864 = vmul.f32 %v803, %v95
    %v865 = vmul.f32 %v808, %v96
    %v866 = vmul.f32 %v813, %v97
    %v867 = vmul.f32 %v818, %v98
    %v868 = vmul.f32 %v823, %v99
    %v869 = vmul.f32 %v828, %v100
    %v870 = vmul.f32 %v833, %v101
    %v871 = vmul.f32 %v838, %v102
    %v872 = vmul.f32 %v843, %v103
    %v873 = vmul.f32 %v848, %v104
    %v874 = vmul.f32 %v853, %v105
    %v875 = vmul.f32 %v858, %v106
    %v876 = vsel %vm121, %v860, 0.0
    %v877 = vsel %vm121, %v861, 0.0
    %v878 = vadd.f32 %v876, %v877
    %v879 = vrot.slane %v878, 4
    %v880 = vadd.f32 %v878, %v879
    %v881 = vrot.slane %v880, 2
    %v882 = vadd.f32 %v880, %v881
    %v883 = vrot.slane %v882, 1
    %v884 = vadd.f32 %v882, %v883
    %v885 = vsel %vm121, %v862, 0.0
    %v886 = vsel %vm121, %v863, 0.0
    %v887 = vadd.f32 %v885, %v886
    %v888 = vrot.slane %v887, 4
    %v889 = vadd.f32 %v887, %v888
    %v890 = vrot.slane %v889, 2
    %v891 = vadd.f32 %v889, %v890
    %v892 = vrot.slane %v891, 1
    %v893 = vadd.f32 %v891, %v892
    %v894 = vsel %vm121, %v864, 0.0
    %v895 = vsel %vm121, %v865, 0.0
    %v896 = vadd.f32 %v894, %v895
    %v897 = vrot.slane %v896, 4
    %v898 = vadd.f32 %v896, %v897
    %v899 = vrot.slane %v898, 2
    %v900 = vadd.f32 %v898, %v899
    %v901 = vrot.slane %v900, 1
    %v902 = vadd.f32 %v900, %v901
    %v903 = vsel %vm121, %v866, 0.0
    %v904 = vsel %vm121, %v867, 0.0
    %v905 = vadd.f32 %v903, %v904
    %v906 = vrot.slane %v905, 4
    %v907 = vadd.f32 %v905, %v906
    %v908 = vrot.slane %v907, 2
    %v909 = vadd.f32 %v907, %v908
    %v910 = vrot.slane %v909, 1
    %v911 = vadd.f32 %v909, %v910
    %v912 = vsel %vm121, %v868, 0.0
    %v913 = vsel %vm121, %v869, 0.0
    %v914 = vadd.f32 %v912, %v913
    %v915 = vrot.slane %v914, 4
    %v916 = vadd.f32 %v914, %v915
    %v917 = vrot.slane %v916, 2
    %v918 = vadd.f32 %v916, %v917
    %v919 = vrot.slane %v918, 1
    %v920 = vadd.f32 %v918, %v919
    %v921 = vsel %vm121, %v870, 0.0
    %v922 = vsel %vm121, %v871, 0.0
    %v923 = vadd.f32 %v921, %v922
    %v924 = vrot.slane %v923, 4
    %v925 = vadd.f32 %v923, %v924
    %v926 = vrot.slane %v925, 2
    %v927 = vadd.f32 %v925, %v926
    %v928 = vrot.slane %v927, 1
    %v929 = vadd.f32 %v927, %v928
    %v930 = vsel %vm121, %v872, 0.0
    %v931 = vsel %vm121, %v873, 0.0
    %v932 = vadd.f32 %v930, %v931
    %v933 = vrot.slane %v932, 4
    %v934 = vadd.f32 %v932, %v933
    %v935 = vrot.slane %v934, 2
    %v936 = vadd.f32 %v934, %v935
    %v937 = vrot.slane %v936, 1
    %v938 = vadd.f32 %v936, %v937
    %v939 = vsel %vm121, %v874, 0.0
    %v940 = vsel %vm121, %v875, 0.0
    %v941 = vadd.f32 %v939, %v940
    %v942 = vrot.slane %v941, 4
    %v943 = vadd.f32 %v941, %v942
    %v944 = vrot.slane %v943, 2
    %v945 = vadd.f32 %v943, %v944
    %v946 = vrot.slane %v945, 1
    %v947 = vadd.f32 %v945, %v946
    %v948 = vtanh.pop %v884
    %v949 = vtanh.pop %v893
    %v950 = vtanh.pop %v902
    %v951 = vtanh.pop %v911
    %v952 = vtanh.pop %v920
    %v953 = vtanh.pop %v929
    %v954 = vtanh.pop %v938
    %v955 = vtanh.pop %v947
    %v956 = vld [vmem:[#allocation7] sm:$0xff]
    %v957 = vld [vmem:[#allocation7 + $0x8] sm:$0xff]
    %v958 = vld [vmem:[#allocation7 + $0x10] sm:$0xff]
    %v959 = vld [vmem:[#allocation7 + $0x18] sm:$0xff]
    %v960 = vld [vmem:[#allocation7 + $0x20] sm:$0xff]
    %v961 = vld [vmem:[#allocation7 + $0x28] sm:$0xff]
    %v962 = vld [vmem:[#allocation7 + $0x30] sm:$0xff]
    %v963 = vld [vmem:[#allocation7 + $0x38] sm:$0xff]
    %v964 = vld [vmem:[#allocation7 + $0x40] sm:$0xff]
    %v965 = vld [vmem:[#allocation7 + $0x48] sm:$0xff]
    %v966 = vld [vmem:[#allocation7 + $0x50] sm:$0xff]
    %v967 = vld [vmem:[#allocation7 + $0x58] sm:$0xff]
    %v968 = vld [vmem:[#allocation7 + $0x60] sm:$0xff]
    %v969 = vld [vmem:[#allocation7 + $0x68] sm:$0xff]
    %v970 = vld [vmem:[#allocation7 + $0x70] sm:$0xff]
    %v971 = vld [vmem:[#allocation7 + $0x78] sm:$0xff]
    %v972 = vld [vmem:[%s1] sm:$0xff]
    %v973 = vld [vmem:[%s1 + $0x8] sm:$0xff]
    %v974 = vld [vmem:[#allocation9] sm:$0xff]
    %v975 = vld [vmem:[#allocation9 + $0x8] sm:$0xff]
    %v976 = vld [vmem:[#allocation9 + $0x10] sm:$0xff]
    %v977 = vld [vmem:[#allocation9 + $0x18] sm:$0xff]
    %v978 = vld [vmem:[%s9] sm:$0x1]
    %v979 = vld [vmem:[%s10] sm:$0x1]
    %v980 = vld [vmem:[#allocation3] sm:$0x1]
    %v982 = vlaneseq
    %v983 = vshrl.u32 %v982, 7
    %v984 = vsub.s32 0, %v983
    %v985 = vrot.slane %v978, %v984
    %v988 = vsel %vm121, %v956, 0
    %v991 = vsel %vm121, %v957, 0
    %v994 = vsel %vm121, %v958, 0
    %v997 = vsel %vm121, %v959, 0
    %v1000 = vsel %vm121, %v960, 0
    %v1003 = vsel %vm121, %v961, 0
    %v1006 = vsel %vm121, %v962, 0
    %v1009 = vsel %vm121, %v963, 0
    %v1012 = vsel %vm121, %v964, 0
    %v1015 = vsel %vm121, %v965, 0
    %v1018 = vsel %vm121, %v966, 0
    %v1021 = vsel %vm121, %v967, 0
    %v1024 = vsel %vm121, %v968, 0
    %v1027 = vsel %vm121, %v969, 0
    %v1030 = vsel %vm121, %v970, 0
    %v1033 = vsel %vm121, %v971, 0
    %1035 = vmatprep.subr.mxu0 0.0
    %1036 = vmatpush1.msra.mxu0 %v974
    %1037 = vmatprep.subr.mxu0 0.0
    %1038 = vmatpush1.msra.mxu0 %v975
    %1039 = vmatprep.subr.mxu0 0.0
    %1040 = vmatpush1.msra.mxu0 %v976
    %1041 = vmatprep.subr.mxu0 0.0
    %1042 = vmatpush1.msra.mxu0 %v977
    %1043 = vmatprep.subr.mxu0 0.0
    %1044 = vmatpush1.msra.mxu0 0.0
    %1045 = vmatprep.subr.mxu0 0.0
    %1046 = vmatpush1.msra.mxu0 0.0
    %1047 = vmatprep.subr.mxu0 0.0
    %1048 = vmatpush1.msra.mxu0 0.0
    %1049 = vmatprep.subr.mxu0 0.0
    %1050 = vmatpush1.msra.mxu0 0.0
    %1051 = vmatprep.subr.mxu0 0.0
    %1052 = vmatpush1.msra.mxu0 0.0
    %1053 = vmatprep.subr.mxu0 0.0
    %1054 = vmatpush1.msra.mxu0 0.0
    %1055 = vmatprep.subr.mxu0 0.0
    %1056 = vmatpush1.msra.mxu0 0.0
    %1057 = vmatprep.subr.mxu0 0.0
    %1058 = vmatpush1.msra.mxu0 0.0
    %1059 = vmatprep.subr.mxu0 0.0
    %1060 = vmatpush1.msra.mxu0 0.0
    %1061 = vmatprep.subr.mxu0 0.0
    %1062 = vmatpush1.msra.mxu0 0.0
    %1063 = vmatprep.subr.mxu0 0.0
    %1064 = vmatpush1.msra.mxu0 0.0
    %1065 = vmatprep.subr.mxu0 0.0
    %1066 = vmatpush1.msra.mxu0 0.0
    %1067 = vmatprep.subr.mxu0 0.0
    %1068 = vmatpush1.msra.mxu0 0.0
    %1069 = vmatprep.subr.mxu0 0.0
    %1070 = vmatpush1.msra.mxu0 0.0
    %1071 = vmatprep.subr.mxu0 0.0
    %1072 = vmatpush1.msra.mxu0 0.0
    %1073 = vmatprep.subr.mxu0 0.0
    %1074 = vmatpush1.msra.mxu0 0.0
    %1075 = vmatprep.subr.mxu0 0.0
    %1076 = vmatpush1.msra.mxu0 0.0
    %1077 = vmatprep.subr.mxu0 0.0
    %1078 = vmatpush1.msra.mxu0 0.0
    %1079 = vmatprep.subr.mxu0 0.0
    %1080 = vmatpush1.msra.mxu0 0.0
    %1081 = vmatprep.subr.mxu0 0.0
    %1082 = vmatpush1.msra.mxu0 0.0
    %1083 = vmatprep.subr.mxu0 0.0
    %1084 = vmatpush1.msra.mxu0 0.0
    %1085 = vmatprep.subr.mxu0 0.0
    %1086 = vmatpush1.msra.mxu0 0.0
    %1087 = vmatprep.subr.mxu0 0.0
    %1088 = vmatpush1.msra.mxu0 0.0
    %1089 = vmatprep.subr.mxu0 0.0
    %1090 = vmatpush1.msra.mxu0 0.0
    %1091 = vmatprep.subr.mxu0 0.0
    %1092 = vmatpush1.msra.mxu0 0.0
    %1093 = vmatprep.subr.mxu0 0.0
    %1094 = vmatpush1.msra.mxu0 0.0
    %1095 = vmatprep.subr.mxu0 0.0
    %1096 = vmatpush1.msra.mxu0 0.0
    %1097 = vmatprep.subr.mxu0 0.0
    %1098 = vmatpush1.msra.mxu0 0.0
    %1099 = vmatprep.mubr.f32.mxu0 0.0
    %1100 = vmatmul.mubr.f32.gmra.mrb[0].mxu0 %v988
    %v1101 = vpop.f32.mrb[0].mxu0
    %v1102 = vadd.f32 %v985, %v1101
    %v1103 = vpop.f32.mrb[0].mxu0
    %1104 = vmatprep.mubr.f32.mxu0 0.0
    %1105 = vmatmul.mubr.f32.gmra.mrb[0].mxu0 %v991
    %v1106 = vpop.f32.mrb[0].mxu0
    %v1107 = vadd.f32 %v985, %v1106
    %v1108 = vpop.f32.mrb[0].mxu0
    %1109 = vmatprep.mubr.f32.mxu0 0.0
    %1110 = vmatmul.mubr.f32.gmra.mrb[0].mxu0 %v994
    %v1111 = vpop.f32.mrb[0].mxu0
    %v1112 = vadd.f32 %v985, %v1111
    %v1113 = vpop.f32.mrb[0].mxu0
    %1114 = vmatprep.mubr.f32.mxu0 0.0
    %1115 = vmatmul.mubr.f32.gmra.mrb[0].mxu0 %v997
    %v1116 = vpop.f32.mrb[0].mxu0
    %v1117 = vadd.f32 %v985, %v1116
    %v1118 = vpop.f32.mrb[0].mxu0
    %1119 = vmatprep.mubr.f32.mxu0 0.0
    %1120 = vmatmul.mubr.f32.gmra.mrb[0].mxu0 %v1000
    %v1121 = vpop.f32.mrb[0].mxu0
    %v1122 = vadd.f32 %v985, %v1121
    %v1123 = vpop.f32.mrb[0].mxu0
    %1124 = vmatprep.mubr.f32.mxu0 0.0
    %1125 = vmatmul.mubr.f32.gmra.mrb[0].mxu0 %v1003
    %v1126 = vpop.f32.mrb[0].mxu0
    %v1127 = vadd.f32 %v985, %v1126
    %v1128 = vpop.f32.mrb[0].mxu0
    %1129 = vmatprep.mubr.f32.mxu0 0.0
    %1130 = vmatmul.mubr.f32.gmra.mrb[0].mxu0 %v1006
    %v1131 = vpop.f32.mrb[0].mxu0
    %v1132 = vadd.f32 %v985, %v1131
    %v1133 = vpop.f32.mrb[0].mxu0
    %1134 = vmatprep.mubr.f32.mxu0 0.0
    %1135 = vmatmul.mubr.f32.gmra.mrb[0].mxu0 %v1009
    %v1136 = vpop.f32.mrb[0].mxu0
    %v1137 = vadd.f32 %v985, %v1136
    %v1138 = vpop.f32.mrb[0].mxu0
    %1139 = vmatprep.mubr.f32.mxu0 0.0
    %1140 = vmatmul.mubr.f32.gmra.mrb[0].mxu0 %v1012
    %v1141 = vpop.f32.mrb[0].mxu0
    %v1142 = vadd.f32 %v985, %v1141
    %v1143 = vpop.f32.mrb[0].mxu0
    %1144 = vmatprep.mubr.f32.mxu0 0.0
    %1145 = vmatmul.mubr.f32.gmra.mrb[0].mxu0 %v1015
    %v1146 = vpop.f32.mrb[0].mxu0
    %v1147 = vadd.f32 %v985, %v1146
    %v1148 = vpop.f32.mrb[0].mxu0
    %1149 = vmatprep.mubr.f32.mxu0 0.0
    %1150 = vmatmul.mubr.f32.gmra.mrb[0].mxu0 %v1018
    %v1151 = vpop.f32.mrb[0].mxu0
    %v1152 = vadd.f32 %v985, %v1151
    %v1153 = vpop.f32.mrb[0].mxu0
    %1154 = vmatprep.mubr.f32.mxu0 0.0
    %1155 = vmatmul.mubr.f32.gmra.mrb[0].mxu0 %v1021
    %v1156 = vpop.f32.mrb[0].mxu0
    %v1157 = vadd.f32 %v985, %v1156
    %v1158 = vpop.f32.mrb[0].mxu0
    %1159 = vmatprep.mubr.f32.mxu0 0.0
    %1160 = vmatmul.mubr.f32.gmra.mrb[0].mxu0 %v1024
    %v1161 = vpop.f32.mrb[0].mxu0
    %v1162 = vadd.f32 %v985, %v1161
    %v1163 = vpop.f32.mrb[0].mxu0
    %1164 = vmatprep.mubr.f32.mxu0 0.0
    %1165 = vmatmul.mubr.f32.gmra.mrb[0].mxu0 %v1027
    %v1166 = vpop.f32.mrb[0].mxu0
    %v1167 = vadd.f32 %v985, %v1166
    %v1168 = vpop.f32.mrb[0].mxu0
    %1169 = vmatprep.mubr.f32.mxu0 0.0
    %1170 = vmatmul.mubr.f32.gmra.mrb[0].mxu0 %v1030
    %v1171 = vpop.f32.mrb[0].mxu0
    %v1172 = vadd.f32 %v985, %v1171
    %v1173 = vpop.f32.mrb[0].mxu0
    %1174 = vmatprep.mubr.f32.mxu0 0.0
    %1175 = vmatmul.mubr.f32.gmra.mrb[0].mxu0 %v1033
    %v1176 = vpop.f32.mrb[0].mxu0
    %v1177 = vadd.f32 %v985, %v1176
    %v1178 = vpop.f32.mrb[0].mxu0
    %1179 = vdwg.mxu0
    %v1180 = vtanh.pop %v1102
    %v1181 = vtanh.pop %v1107
    %v1182 = vtanh.pop %v1112
    %v1183 = vtanh.pop %v1117
    %v1184 = vtanh.pop %v1122
    %v1185 = vtanh.pop %v1127
    %v1186 = vtanh.pop %v1132
    %v1187 = vtanh.pop %v1137
    %v1188 = vtanh.pop %v1142
    %v1189 = vtanh.pop %v1147
    %v1190 = vtanh.pop %v1152
    %v1191 = vtanh.pop %v1157
    %v1192 = vtanh.pop %v1162
    %v1193 = vtanh.pop %v1167
    %v1194 = vtanh.pop %v1172
    %v1195 = vtanh.pop %v1177
    %v1197 = vlaneseq
    %v1198 = vshrl.u32 %v1197, 7
    %v1199 = vsub.s32 0, %v1198
    %v1200 = vrot.slane %v979, %v1199
    %v1202 = vmul.f32 %v1180, %v1200
    %v1203 = vmul.f32 %v1181, %v1200
    %v1204 = vmul.f32 %v1182, %v1200
    %v1205 = vmul.f32 %v1183, %v1200
    %v1206 = vmul.f32 %v1184, %v1200
    %v1207 = vmul.f32 %v1185, %v1200
    %v1208 = vmul.f32 %v1186, %v1200
    %v1209 = vmul.f32 %v1187, %v1200
    %v1210 = vmul.f32 %v1188, %v1200
    %v1211 = vmul.f32 %v1189, %v1200
    %v1212 = vmul.f32 %v1190, %v1200
    %v1213 = vmul.f32 %v1191, %v1200
    %v1214 = vmul.f32 %v1192, %v1200
    %v1215 = vmul.f32 %v1193, %v1200
    %v1216 = vmul.f32 %v1194, %v1200
    %v1217 = vmul.f32 %v1195, %v1200
    %v1218 = vsel %vm121, %v1202, 0.0
    %1219 = vadd.xlane.f32.xlu0 %v1218
    %v1220 = vpop.xlane.xlu0 %1219
    %v1221 = vsel %vm121, %v1203, 0.0
    %1222 = vadd.xlane.f32.xlu0 %v1221
    %v1223 = vpop.xlane.xlu0 %1222
    %v1224 = vsel %vm121, %v1204, 0.0
    %1225 = vadd.xlane.f32.xlu0 %v1224
    %v1226 = vpop.xlane.xlu0 %1225
    %v1227 = vsel %vm121, %v1205, 0.0
    %1228 = vadd.xlane.f32.xlu0 %v1227
    %v1229 = vpop.xlane.xlu0 %1228
    %v1230 = vsel %vm121, %v1206, 0.0
    %1231 = vadd.xlane.f32.xlu0 %v1230
    %v1232 = vpop.xlane.xlu0 %1231
    %v1233 = vsel %vm121, %v1207, 0.0
    %1234 = vadd.xlane.f32.xlu0 %v1233
    %v1235 = vpop.xlane.xlu0 %1234
    %v1236 = vsel %vm121, %v1208, 0.0
    %1237 = vadd.xlane.f32.xlu0 %v1236
    %v1238 = vpop.xlane.xlu0 %1237
    %v1239 = vsel %vm121, %v1209, 0.0
    %1240 = vadd.xlane.f32.xlu0 %v1239
    %v1241 = vpop.xlane.xlu0 %1240
    %v1242 = vsel %vm121, %v1210, 0.0
    %1243 = vadd.xlane.f32.xlu0 %v1242
    %v1244 = vpop.xlane.xlu0 %1243
    %v1245 = vsel %vm121, %v1211, 0.0
    %1246 = vadd.xlane.f32.xlu0 %v1245
    %v1247 = vpop.xlane.xlu0 %1246
    %v1248 = vsel %vm121, %v1212, 0.0
    %1249 = vadd.xlane.f32.xlu0 %v1248
    %v1250 = vpop.xlane.xlu0 %1249
    %v1251 = vsel %vm121, %v1213, 0.0
    %1252 = vadd.xlane.f32.xlu0 %v1251
    %v1253 = vpop.xlane.xlu0 %1252
    %v1254 = vsel %vm121, %v1214, 0.0
    %1255 = vadd.xlane.f32.xlu0 %v1254
    %v1256 = vpop.xlane.xlu0 %1255
    %v1257 = vsel %vm121, %v1215, 0.0
    %1258 = vadd.xlane.f32.xlu0 %v1257
    %v1259 = vpop.xlane.xlu0 %1258
    %v1260 = vsel %vm121, %v1216, 0.0
    %1261 = vadd.xlane.f32.xlu0 %v1260
    %v1262 = vpop.xlane.xlu0 %1261
    %v1263 = vsel %vm121, %v1217, 0.0
    %1264 = vadd.xlane.f32.xlu0 %v1263
    %v1265 = vpop.xlane.xlu0 %1264
    %v1267 = vlaneseq
    %v1268 = vshrl.u32 %v1267, 7
    %v1269 = vsub.s32 0, %v1268
    %v1270 = vrot.slane %v980, %v1269
    %v1272 = vadd.f32 %v1220, %v1270
    %v1273 = vadd.f32 %v1223, %v1270
    %v1274 = vadd.f32 %v1226, %v1270
    %v1275 = vadd.f32 %v1229, %v1270
    %v1276 = vadd.f32 %v1232, %v1270
    %v1277 = vadd.f32 %v1235, %v1270
    %v1278 = vadd.f32 %v1238, %v1270
    %v1279 = vadd.f32 %v1241, %v1270
    %v1280 = vadd.f32 %v1244, %v1270
    %v1281 = vadd.f32 %v1247, %v1270
    %v1282 = vadd.f32 %v1250, %v1270
    %v1283 = vadd.f32 %v1253, %v1270
    %v1284 = vadd.f32 %v1256, %v1270
    %v1285 = vadd.f32 %v1259, %v1270
    %v1286 = vadd.f32 %v1262, %v1270
    %v1287 = vadd.f32 %v1265, %v1270
    %v1288 = vcombine.high %v972, %v972
    %v1290 = vunpack.c.l.s4 1966171168
    %v1291 = vunpack.c.0.s8 %v1290
    %v1292 = vlaneseq
    %v1293 = vshrl.u32 %v1292, 7
    %v1294 = vsub.s32 %v1291, %v1293
    %v1295 = vrot.slane %v972, %v1294
    %v1297 = vunpack.c.l.s4 1966171168
    %v1298 = vunpack.c.0.s8 %v1297
    %v1299 = vlaneseq
    %v1300 = vshrl.u32 %v1299, 7
    %v1301 = vsub.s32 %v1298, %v1300
    %v1302 = vrot.slane %v1288, %v1301
    %v1303 = vcombine.high %v1295, %v1295
    %v1304 = vcombine.high %v1302, %v1302
    %v1306 = vunpack.c.l.s4 1966171168
    %v1307 = vunpack.c.0.s8 %v1306
    %v1308 = vlaneseq
    %v1309 = vshrl.u32 %v1308, 7
    %v1310 = vsub.s32 %v1307, %v1309
    %v1311 = vrot.slane %v1295, %v1310
    %v1313 = vunpack.c.l.s4 1966171168
    %v1314 = vunpack.c.0.s8 %v1313
    %v1315 = vlaneseq
    %v1316 = vshrl.u32 %v1315, 7
    %v1317 = vsub.s32 %v1314, %v1316
    %v1318 = vrot.slane %v1302, %v1317
    %v1320 = vunpack.c.l.s4 1966171168
    %v1321 = vunpack.c.0.s8 %v1320
    %v1322 = vlaneseq
    %v1323 = vshrl.u32 %v1322, 7
    %v1324 = vsub.s32 %v1321, %v1323
    %v1325 = vrot.slane %v1303, %v1324
    %v1327 = vunpack.c.l.s4 1966171168
    %v1328 = vunpack.c.0.s8 %v1327
    %v1329 = vlaneseq
    %v1330 = vshrl.u32 %v1329, 7
    %v1331 = vsub.s32 %v1328, %v1330
    %v1332 = vrot.slane %v1304, %v1331
    %v1333 = vcombine.high %v1311, %v1311
    %v1334 = vcombine.high %v1318, %v1318
    %v1335 = vcombine.high %v1325, %v1325
    %v1336 = vcombine.high %v1332, %v1332
    %v1337 = vcombine.high %v973, %v973
    %v1339 = vunpack.c.l.s4 1966171168
    %v1340 = vunpack.c.0.s8 %v1339
    %v1341 = vlaneseq
    %v1342 = vshrl.u32 %v1341, 7
    %v1343 = vsub.s32 %v1340, %v1342
    %v1344 = vrot.slane %v973, %v1343
    %v1346 = vunpack.c.l.s4 1966171168
    %v1347 = vunpack.c.0.s8 %v1346
    %v1348 = vlaneseq
    %v1349 = vshrl.u32 %v1348, 7
    %v1350 = vsub.s32 %v1347, %v1349
    %v1351 = vrot.slane %v1337, %v1350
    %v1352 = vcombine.high %v1344, %v1344
    %v1353 = vcombine.high %v1351, %v1351
    %v1355 = vunpack.c.l.s4 1966171168
    %v1356 = vunpack.c.0.s8 %v1355
    %v1357 = vlaneseq
    %v1358 = vshrl.u32 %v1357, 7
    %v1359 = vsub.s32 %v1356, %v1358
    %v1360 = vrot.slane %v1344, %v1359
    %v1362 = vunpack.c.l.s4 1966171168
    %v1363 = vunpack.c.0.s8 %v1362
    %v1364 = vlaneseq
    %v1365 = vshrl.u32 %v1364, 7
    %v1366 = vsub.s32 %v1363, %v1365
    %v1367 = vrot.slane %v1351, %v1366
    %v1369 = vunpack.c.l.s4 1966171168
    %v1370 = vunpack.c.0.s8 %v1369
    %v1371 = vlaneseq
    %v1372 = vshrl.u32 %v1371, 7
    %v1373 = vsub.s32 %v1370, %v1372
    %v1374 = vrot.slane %v1352, %v1373
    %v1376 = vunpack.c.l.s4 1966171168
    %v1377 = vunpack.c.0.s8 %v1376
    %v1378 = vlaneseq
    %v1379 = vshrl.u32 %v1378, 7
    %v1380 = vsub.s32 %v1377, %v1379
    %v1381 = vrot.slane %v1353, %v1380
    %v1382 = vcombine.high %v1360, %v1360
    %v1383 = vcombine.high %v1367, %v1367
    %v1384 = vcombine.high %v1374, %v1374
    %v1385 = vcombine.high %v1381, %v1381
    %v1386 = vlaneseq
    %v1387 = vshrl.u32 %v1386, 7
    %v1388 = vsub.s32 0, %v1387
    %v1389 = vrot.slane %v1311, %v1388
    %v1390 = vlaneseq
    %v1391 = vshrl.u32 %v1390, 7
    %v1392 = vsub.s32 0, %v1391
    %v1393 = vrot.slane %v1325, %v1392
    %v1394 = vlaneseq
    %v1395 = vshrl.u32 %v1394, 7
    %v1396 = vsub.s32 0, %v1395
    %v1397 = vrot.slane %v1333, %v1396
    %v1398 = vlaneseq
    %v1399 = vshrl.u32 %v1398, 7
    %v1400 = vsub.s32 0, %v1399
    %v1401 = vrot.slane %v1335, %v1400
    %v1402 = vlaneseq
    %v1403 = vshrl.u32 %v1402, 7
    %v1404 = vsub.s32 0, %v1403
    %v1405 = vrot.slane %v1318, %v1404
    %v1406 = vlaneseq
    %v1407 = vshrl.u32 %v1406, 7
    %v1408 = vsub.s32 0, %v1407
    %v1409 = vrot.slane %v1332, %v1408
    %v1410 = vlaneseq
    %v1411 = vshrl.u32 %v1410, 7
    %v1412 = vsub.s32 0, %v1411
    %v1413 = vrot.slane %v1334, %v1412
    %v1414 = vlaneseq
    %v1415 = vshrl.u32 %v1414, 7
    %v1416 = vsub.s32 0, %v1415
    %v1417 = vrot.slane %v1336, %v1416
    %v1418 = vlaneseq
    %v1419 = vshrl.u32 %v1418, 7
    %v1420 = vsub.s32 0, %v1419
    %v1421 = vrot.slane %v1360, %v1420
    %v1422 = vlaneseq
    %v1423 = vshrl.u32 %v1422, 7
    %v1424 = vsub.s32 0, %v1423
    %v1425 = vrot.slane %v1374, %v1424
    %v1426 = vlaneseq
    %v1427 = vshrl.u32 %v1426, 7
    %v1428 = vsub.s32 0, %v1427
    %v1429 = vrot.slane %v1382, %v1428
    %v1430 = vlaneseq
    %v1431 = vshrl.u32 %v1430, 7
    %v1432 = vsub.s32 0, %v1431
    %v1433 = vrot.slane %v1384, %v1432
    %v1434 = vlaneseq
    %v1435 = vshrl.u32 %v1434, 7
    %v1436 = vsub.s32 0, %v1435
    %v1437 = vrot.slane %v1367, %v1436
    %v1438 = vlaneseq
    %v1439 = vshrl.u32 %v1438, 7
    %v1440 = vsub.s32 0, %v1439
    %v1441 = vrot.slane %v1381, %v1440
    %v1442 = vlaneseq
    %v1443 = vshrl.u32 %v1442, 7
    %v1444 = vsub.s32 0, %v1443
    %v1445 = vrot.slane %v1383, %v1444
    %v1446 = vlaneseq
    %v1447 = vshrl.u32 %v1446, 7
    %v1448 = vsub.s32 0, %v1447
    %v1449 = vrot.slane %v1385, %v1448
    %vm1450 = vcmp.lt.s32.totalorder %v424, %v1389
    %vm1451 = vcmp.lt.s32.totalorder %v424, %v1393
    %vm1452 = vcmp.lt.s32.totalorder %v424, %v1397
    %vm1453 = vcmp.lt.s32.totalorder %v424, %v1401
    %vm1454 = vcmp.lt.s32.totalorder %v424, %v1405
    %vm1455 = vcmp.lt.s32.totalorder %v424, %v1409
    %vm1456 = vcmp.lt.s32.totalorder %v424, %v1413
    %vm1457 = vcmp.lt.s32.totalorder %v424, %v1417
    %vm1458 = vcmp.lt.s32.totalorder %v424, %v1421
    %vm1459 = vcmp.lt.s32.totalorder %v424, %v1425
    %vm1460 = vcmp.lt.s32.totalorder %v424, %v1429
    %vm1461 = vcmp.lt.s32.totalorder %v424, %v1433
    %vm1462 = vcmp.lt.s32.totalorder %v424, %v1437
    %vm1463 = vcmp.lt.s32.totalorder %v424, %v1441
    %vm1464 = vcmp.lt.s32.totalorder %v424, %v1445
    %vm1465 = vcmp.lt.s32.totalorder %v424, %v1449
    %v1466 = vsel %vm1450, %v1272, -1e+30
    %v1467 = vsel %vm1451, %v1273, -1e+30
    %v1468 = vsel %vm1452, %v1274, -1e+30
    %v1469 = vsel %vm1453, %v1275, -1e+30
    %v1470 = vsel %vm1454, %v1276, -1e+30
    %v1471 = vsel %vm1455, %v1277, -1e+30
    %v1472 = vsel %vm1456, %v1278, -1e+30
    %v1473 = vsel %vm1457, %v1279, -1e+30
    %v1474 = vsel %vm1458, %v1280, -1e+30
    %v1475 = vsel %vm1459, %v1281, -1e+30
    %v1476 = vsel %vm1460, %v1282, -1e+30
    %v1477 = vsel %vm1461, %v1283, -1e+30
    %v1478 = vsel %vm1462, %v1284, -1e+30
    %v1479 = vsel %vm1463, %v1285, -1e+30
    %v1480 = vsel %vm1464, %v1286, -1e+30
    %v1481 = vsel %vm1465, %v1287, -1e+30
    %v1482 = vsel %vm539, %v1466, -inf
    %v1483 = vrot.slane %v1482, 4
    %v1484 = vmax.f32 %v1482, %v1483
    %v1485 = vrot.slane %v1484, 2
    %v1486 = vmax.f32 %v1484, %v1485
    %v1487 = vrot.slane %v1486, 1
    %v1488 = vmax.f32 %v1486, %v1487
    %v1489 = vsel %vm539, %v1467, -inf
    %v1490 = vrot.slane %v1489, 4
    %v1491 = vmax.f32 %v1489, %v1490
    %v1492 = vrot.slane %v1491, 2
    %v1493 = vmax.f32 %v1491, %v1492
    %v1494 = vrot.slane %v1493, 1
    %v1495 = vmax.f32 %v1493, %v1494
    %v1496 = vsel %vm539, %v1468, -inf
    %v1497 = vrot.slane %v1496, 4
    %v1498 = vmax.f32 %v1496, %v1497
    %v1499 = vrot.slane %v1498, 2
    %v1500 = vmax.f32 %v1498, %v1499
    %v1501 = vrot.slane %v1500, 1
    %v1502 = vmax.f32 %v1500, %v1501
    %v1503 = vsel %vm539, %v1469, -inf
    %v1504 = vrot.slane %v1503, 4
    %v1505 = vmax.f32 %v1503, %v1504
    %v1506 = vrot.slane %v1505, 2
    %v1507 = vmax.f32 %v1505, %v1506
    %v1508 = vrot.slane %v1507, 1
    %v1509 = vmax.f32 %v1507, %v1508
    %v1510 = vsel %vm539, %v1470, -inf
    %v1511 = vrot.slane %v1510, 4
    %v1512 = vmax.f32 %v1510, %v1511
    %v1513 = vrot.slane %v1512, 2
    %v1514 = vmax.f32 %v1512, %v1513
    %v1515 = vrot.slane %v1514, 1
    %v1516 = vmax.f32 %v1514, %v1515
    %v1517 = vsel %vm539, %v1471, -inf
    %v1518 = vrot.slane %v1517, 4
    %v1519 = vmax.f32 %v1517, %v1518
    %v1520 = vrot.slane %v1519, 2
    %v1521 = vmax.f32 %v1519, %v1520
    %v1522 = vrot.slane %v1521, 1
    %v1523 = vmax.f32 %v1521, %v1522
    %v1524 = vsel %vm539, %v1472, -inf
    %v1525 = vrot.slane %v1524, 4
    %v1526 = vmax.f32 %v1524, %v1525
    %v1527 = vrot.slane %v1526, 2
    %v1528 = vmax.f32 %v1526, %v1527
    %v1529 = vrot.slane %v1528, 1
    %v1530 = vmax.f32 %v1528, %v1529
    %v1531 = vsel %vm539, %v1473, -inf
    %v1532 = vrot.slane %v1531, 4
    %v1533 = vmax.f32 %v1531, %v1532
    %v1534 = vrot.slane %v1533, 2
    %v1535 = vmax.f32 %v1533, %v1534
    %v1536 = vrot.slane %v1535, 1
    %v1537 = vmax.f32 %v1535, %v1536
    %v1538 = vsel %vm539, %v1474, -inf
    %v1539 = vrot.slane %v1538, 4
    %v1540 = vmax.f32 %v1538, %v1539
    %v1541 = vrot.slane %v1540, 2
    %v1542 = vmax.f32 %v1540, %v1541
    %v1543 = vrot.slane %v1542, 1
    %v1544 = vmax.f32 %v1542, %v1543
    %v1545 = vsel %vm539, %v1475, -inf
    %v1546 = vrot.slane %v1545, 4
    %v1547 = vmax.f32 %v1545, %v1546
    %v1548 = vrot.slane %v1547, 2
    %v1549 = vmax.f32 %v1547, %v1548
    %v1550 = vrot.slane %v1549, 1
    %v1551 = vmax.f32 %v1549, %v1550
    %v1552 = vsel %vm539, %v1476, -inf
    %v1553 = vrot.slane %v1552, 4
    %v1554 = vmax.f32 %v1552, %v1553
    %v1555 = vrot.slane %v1554, 2
    %v1556 = vmax.f32 %v1554, %v1555
    %v1557 = vrot.slane %v1556, 1
    %v1558 = vmax.f32 %v1556, %v1557
    %v1559 = vsel %vm539, %v1477, -inf
    %v1560 = vrot.slane %v1559, 4
    %v1561 = vmax.f32 %v1559, %v1560
    %v1562 = vrot.slane %v1561, 2
    %v1563 = vmax.f32 %v1561, %v1562
    %v1564 = vrot.slane %v1563, 1
    %v1565 = vmax.f32 %v1563, %v1564
    %v1566 = vsel %vm539, %v1478, -inf
    %v1567 = vrot.slane %v1566, 4
    %v1568 = vmax.f32 %v1566, %v1567
    %v1569 = vrot.slane %v1568, 2
    %v1570 = vmax.f32 %v1568, %v1569
    %v1571 = vrot.slane %v1570, 1
    %v1572 = vmax.f32 %v1570, %v1571
    %v1573 = vsel %vm539, %v1479, -inf
    %v1574 = vrot.slane %v1573, 4
    %v1575 = vmax.f32 %v1573, %v1574
    %v1576 = vrot.slane %v1575, 2
    %v1577 = vmax.f32 %v1575, %v1576
    %v1578 = vrot.slane %v1577, 1
    %v1579 = vmax.f32 %v1577, %v1578
    %v1580 = vsel %vm539, %v1480, -inf
    %v1581 = vrot.slane %v1580, 4
    %v1582 = vmax.f32 %v1580, %v1581
    %v1583 = vrot.slane %v1582, 2
    %v1584 = vmax.f32 %v1582, %v1583
    %v1585 = vrot.slane %v1584, 1
    %v1586 = vmax.f32 %v1584, %v1585
    %v1587 = vsel %vm539, %v1481, -inf
    %v1588 = vrot.slane %v1587, 4
    %v1589 = vmax.f32 %v1587, %v1588
    %v1590 = vrot.slane %v1589, 2
    %v1591 = vmax.f32 %v1589, %v1590
    %v1592 = vrot.slane %v1591, 1
    %v1593 = vmax.f32 %v1591, %v1592
    %v1594 = vsub.f32 %v1466, %v1488
    %v1595 = vsub.f32 %v1467, %v1495
    %v1596 = vsub.f32 %v1468, %v1502
    %v1597 = vsub.f32 %v1469, %v1509
    %v1598 = vsub.f32 %v1470, %v1516
    %v1599 = vsub.f32 %v1471, %v1523
    %v1600 = vsub.f32 %v1472, %v1530
    %v1601 = vsub.f32 %v1473, %v1537
    %v1602 = vsub.f32 %v1474, %v1544
    %v1603 = vsub.f32 %v1475, %v1551
    %v1604 = vsub.f32 %v1476, %v1558
    %v1605 = vsub.f32 %v1477, %v1565
    %v1606 = vsub.f32 %v1478, %v1572
    %v1607 = vsub.f32 %v1479, %v1579
    %v1608 = vsub.f32 %v1480, %v1586
    %v1609 = vsub.f32 %v1481, %v1593
    %v1610 = vmul.f32 %v1594, 1.442695
    %v1611 = vpow.pop %v1610
    %v1612 = vmul.f32 %v1595, 1.442695
    %v1613 = vpow.pop %v1612
    %v1614 = vmul.f32 %v1596, 1.442695
    %v1615 = vpow.pop %v1614
    %v1616 = vmul.f32 %v1597, 1.442695
    %v1617 = vpow.pop %v1616
    %v1618 = vmul.f32 %v1598, 1.442695
    %v1619 = vpow.pop %v1618
    %v1620 = vmul.f32 %v1599, 1.442695
    %v1621 = vpow.pop %v1620
    %v1622 = vmul.f32 %v1600, 1.442695
    %v1623 = vpow.pop %v1622
    %v1624 = vmul.f32 %v1601, 1.442695
    %v1625 = vpow.pop %v1624
    %v1626 = vmul.f32 %v1602, 1.442695
    %v1627 = vpow.pop %v1626
    %v1628 = vmul.f32 %v1603, 1.442695
    %v1629 = vpow.pop %v1628
    %v1630 = vmul.f32 %v1604, 1.442695
    %v1631 = vpow.pop %v1630
    %v1632 = vmul.f32 %v1605, 1.442695
    %v1633 = vpow.pop %v1632
    %v1634 = vmul.f32 %v1606, 1.442695
    %v1635 = vpow.pop %v1634
    %v1636 = vmul.f32 %v1607, 1.442695
    %v1637 = vpow.pop %v1636
    %v1638 = vmul.f32 %v1608, 1.442695
    %v1639 = vpow.pop %v1638
    %v1640 = vmul.f32 %v1609, 1.442695
    %v1641 = vpow.pop %v1640
    %v1642 = vsel %vm1450, %v1611, 0.0
    %v1643 = vsel %vm1451, %v1613, 0.0
    %v1644 = vsel %vm1452, %v1615, 0.0
    %v1645 = vsel %vm1453, %v1617, 0.0
    %v1646 = vsel %vm1454, %v1619, 0.0
    %v1647 = vsel %vm1455, %v1621, 0.0
    %v1648 = vsel %vm1456, %v1623, 0.0
    %v1649 = vsel %vm1457, %v1625, 0.0
    %v1650 = vsel %vm1458, %v1627, 0.0
    %v1651 = vsel %vm1459, %v1629, 0.0
    %v1652 = vsel %vm1460, %v1631, 0.0
    %v1653 = vsel %vm1461, %v1633, 0.0
    %v1654 = vsel %vm1462, %v1635, 0.0
    %v1655 = vsel %vm1463, %v1637, 0.0
    %v1656 = vsel %vm1464, %v1639, 0.0
    %v1657 = vsel %vm1465, %v1641, 0.0
    %v1658 = vsel %vm539, %v1642, 0.0
    %v1659 = vrot.slane %v1658, 4
    %v1660 = vadd.f32 %v1658, %v1659
    %v1661 = vrot.slane %v1660, 2
    %v1662 = vadd.f32 %v1660, %v1661
    %v1663 = vrot.slane %v1662, 1
    %v1664 = vadd.f32 %v1662, %v1663
    %v1665 = vsel %vm539, %v1643, 0.0
    %v1666 = vrot.slane %v1665, 4
    %v1667 = vadd.f32 %v1665, %v1666
    %v1668 = vrot.slane %v1667, 2
    %v1669 = vadd.f32 %v1667, %v1668
    %v1670 = vrot.slane %v1669, 1
    %v1671 = vadd.f32 %v1669, %v1670
    %v1672 = vsel %vm539, %v1644, 0.0
    %v1673 = vrot.slane %v1672, 4
    %v1674 = vadd.f32 %v1672, %v1673
    %v1675 = vrot.slane %v1674, 2
    %v1676 = vadd.f32 %v1674, %v1675
    %v1677 = vrot.slane %v1676, 1
    %v1678 = vadd.f32 %v1676, %v1677
    %v1679 = vsel %vm539, %v1645, 0.0
    %v1680 = vrot.slane %v1679, 4
    %v1681 = vadd.f32 %v1679, %v1680
    %v1682 = vrot.slane %v1681, 2
    %v1683 = vadd.f32 %v1681, %v1682
    %v1684 = vrot.slane %v1683, 1
    %v1685 = vadd.f32 %v1683, %v1684
    %v1686 = vsel %vm539, %v1646, 0.0
    %v1687 = vrot.slane %v1686, 4
    %v1688 = vadd.f32 %v1686, %v1687
    %v1689 = vrot.slane %v1688, 2
    %v1690 = vadd.f32 %v1688, %v1689
    %v1691 = vrot.slane %v1690, 1
    %v1692 = vadd.f32 %v1690, %v1691
    %v1693 = vsel %vm539, %v1647, 0.0
    %v1694 = vrot.slane %v1693, 4
    %v1695 = vadd.f32 %v1693, %v1694
    %v1696 = vrot.slane %v1695, 2
    %v1697 = vadd.f32 %v1695, %v1696
    %v1698 = vrot.slane %v1697, 1
    %v1699 = vadd.f32 %v1697, %v1698
    %v1700 = vsel %vm539, %v1648, 0.0
    %v1701 = vrot.slane %v1700, 4
    %v1702 = vadd.f32 %v1700, %v1701
    %v1703 = vrot.slane %v1702, 2
    %v1704 = vadd.f32 %v1702, %v1703
    %v1705 = vrot.slane %v1704, 1
    %v1706 = vadd.f32 %v1704, %v1705
    %v1707 = vsel %vm539, %v1649, 0.0
    %v1708 = vrot.slane %v1707, 4
    %v1709 = vadd.f32 %v1707, %v1708
    %v1710 = vrot.slane %v1709, 2
    %v1711 = vadd.f32 %v1709, %v1710
    %v1712 = vrot.slane %v1711, 1
    %v1713 = vadd.f32 %v1711, %v1712
    %v1714 = vsel %vm539, %v1650, 0.0
    %v1715 = vrot.slane %v1714, 4
    %v1716 = vadd.f32 %v1714, %v1715
    %v1717 = vrot.slane %v1716, 2
    %v1718 = vadd.f32 %v1716, %v1717
    %v1719 = vrot.slane %v1718, 1
    %v1720 = vadd.f32 %v1718, %v1719
    %v1721 = vsel %vm539, %v1651, 0.0
    %v1722 = vrot.slane %v1721, 4
    %v1723 = vadd.f32 %v1721, %v1722
    %v1724 = vrot.slane %v1723, 2
    %v1725 = vadd.f32 %v1723, %v1724
    %v1726 = vrot.slane %v1725, 1
    %v1727 = vadd.f32 %v1725, %v1726
    %v1728 = vsel %vm539, %v1652, 0.0
    %v1729 = vrot.slane %v1728, 4
    %v1730 = vadd.f32 %v1728, %v1729
    %v1731 = vrot.slane %v1730, 2
    %v1732 = vadd.f32 %v1730, %v1731
    %v1733 = vrot.slane %v1732, 1
    %v1734 = vadd.f32 %v1732, %v1733
    %v1735 = vsel %vm539, %v1653, 0.0
    %v1736 = vrot.slane %v1735, 4
    %v1737 = vadd.f32 %v1735, %v1736
    %v1738 = vrot.slane %v1737, 2
    %v1739 = vadd.f32 %v1737, %v1738
    %v1740 = vrot.slane %v1739, 1
    %v1741 = vadd.f32 %v1739, %v1740
    %v1742 = vsel %vm539, %v1654, 0.0
    %v1743 = vrot.slane %v1742, 4
    %v1744 = vadd.f32 %v1742, %v1743
    %v1745 = vrot.slane %v1744, 2
    %v1746 = vadd.f32 %v1744, %v1745
    %v1747 = vrot.slane %v1746, 1
    %v1748 = vadd.f32 %v1746, %v1747
    %v1749 = vsel %vm539, %v1655, 0.0
    %v1750 = vrot.slane %v1749, 4
    %v1751 = vadd.f32 %v1749, %v1750
    %v1752 = vrot.slane %v1751, 2
    %v1753 = vadd.f32 %v1751, %v1752
    %v1754 = vrot.slane %v1753, 1
    %v1755 = vadd.f32 %v1753, %v1754
    %v1756 = vsel %vm539, %v1656, 0.0
    %v1757 = vrot.slane %v1756, 4
    %v1758 = vadd.f32 %v1756, %v1757
    %v1759 = vrot.slane %v1758, 2
    %v1760 = vadd.f32 %v1758, %v1759
    %v1761 = vrot.slane %v1760, 1
    %v1762 = vadd.f32 %v1760, %v1761
    %v1763 = vsel %vm539, %v1657, 0.0
    %v1764 = vrot.slane %v1763, 4
    %v1765 = vadd.f32 %v1763, %v1764
    %v1766 = vrot.slane %v1765, 2
    %v1767 = vadd.f32 %v1765, %v1766
    %v1768 = vrot.slane %v1767, 1
    %v1769 = vadd.f32 %v1767, %v1768
    %v1770 = vmax.f32 %v1664, 1e-30
    %v1771 = vmax.f32 %v1671, 1e-30
    %v1772 = vmax.f32 %v1678, 1e-30
    %v1773 = vmax.f32 %v1685, 1e-30
    %v1774 = vmax.f32 %v1692, 1e-30
    %v1775 = vmax.f32 %v1699, 1e-30
    %v1776 = vmax.f32 %v1706, 1e-30
    %v1777 = vmax.f32 %v1713, 1e-30
    %v1778 = vmax.f32 %v1720, 1e-30
    %v1779 = vmax.f32 %v1727, 1e-30
    %v1780 = vmax.f32 %v1734, 1e-30
    %v1781 = vmax.f32 %v1741, 1e-30
    %v1782 = vmax.f32 %v1748, 1e-30
    %v1783 = vmax.f32 %v1755, 1e-30
    %v1784 = vmax.f32 %v1762, 1e-30
    %v1785 = vmax.f32 %v1769, 1e-30
    %v1786 = vrcp.pop %v1770
    %v1787 = vrcp.pop %v1771
    %v1788 = vrcp.pop %v1772
    %v1789 = vrcp.pop %v1773
    %v1790 = vrcp.pop %v1774
    %v1791 = vrcp.pop %v1775
    %v1792 = vrcp.pop %v1776
    %v1793 = vrcp.pop %v1777
    %v1794 = vrcp.pop %v1778
    %v1795 = vrcp.pop %v1779
    %v1796 = vrcp.pop %v1780
    %v1797 = vrcp.pop %v1781
    %v1798 = vrcp.pop %v1782
    %v1799 = vrcp.pop %v1783
    %v1800 = vrcp.pop %v1784
    %v1801 = vrcp.pop %v1785
    %v1802 = vmul.f32 %v1642, %v1786
    %v1803 = vmul.f32 %v1643, %v1787
    %v1804 = vmul.f32 %v1644, %v1788
    %v1805 = vmul.f32 %v1645, %v1789
    %v1806 = vmul.f32 %v1646, %v1790
    %v1807 = vmul.f32 %v1647, %v1791
    %v1808 = vmul.f32 %v1648, %v1792
    %v1809 = vmul.f32 %v1649, %v1793
    %v1810 = vmul.f32 %v1650, %v1794
    %v1811 = vmul.f32 %v1651, %v1795
    %v1812 = vmul.f32 %v1652, %v1796
    %v1813 = vmul.f32 %v1653, %v1797
    %v1814 = vmul.f32 %v1654, %v1798
    %v1815 = vmul.f32 %v1655, %v1799
    %v1816 = vmul.f32 %v1656, %v1800
    %v1817 = vmul.f32 %v1657, %v1801
    %1819 = vset.pattern.permute.xlu0 0
    %1820 = vperm.xlu0 %1819, %v1802
    %v1821 = vpop.permute.xlu0 %1820
    %1824 = vset.pattern.permute.xlu0 0
    %1825 = vperm.xlu0 %1824, %v1803
    %v1826 = vpop.permute.xlu0 %1825
    %1829 = vset.pattern.permute.xlu0 0
    %1830 = vperm.xlu0 %1829, %v1804
    %v1831 = vpop.permute.xlu0 %1830
    %1834 = vset.pattern.permute.xlu0 0
    %1835 = vperm.xlu0 %1834, %v1805
    %v1836 = vpop.permute.xlu0 %1835
    %1839 = vset.pattern.permute.xlu0 0
    %1840 = vperm.xlu0 %1839, %v1806
    %v1841 = vpop.permute.xlu0 %1840
    %1844 = vset.pattern.permute.xlu0 0
    %1845 = vperm.xlu0 %1844, %v1807
    %v1846 = vpop.permute.xlu0 %1845
    %1849 = vset.pattern.permute.xlu0 0
    %1850 = vperm.xlu0 %1849, %v1808
    %v1851 = vpop.permute.xlu0 %1850
    %1854 = vset.pattern.permute.xlu0 0
    %1855 = vperm.xlu0 %1854, %v1809
    %v1856 = vpop.permute.xlu0 %1855
    %1859 = vset.pattern.permute.xlu0 0
    %1860 = vperm.xlu0 %1859, %v1810
    %v1861 = vpop.permute.xlu0 %1860
    %1864 = vset.pattern.permute.xlu0 0
    %1865 = vperm.xlu0 %1864, %v1811
    %v1866 = vpop.permute.xlu0 %1865
    %1869 = vset.pattern.permute.xlu0 0
    %1870 = vperm.xlu0 %1869, %v1812
    %v1871 = vpop.permute.xlu0 %1870
    %1874 = vset.pattern.permute.xlu0 0
    %1875 = vperm.xlu0 %1874, %v1813
    %v1876 = vpop.permute.xlu0 %1875
    %1879 = vset.pattern.permute.xlu0 0
    %1880 = vperm.xlu0 %1879, %v1814
    %v1881 = vpop.permute.xlu0 %1880
    %1884 = vset.pattern.permute.xlu0 0
    %1885 = vperm.xlu0 %1884, %v1815
    %v1886 = vpop.permute.xlu0 %1885
    %1889 = vset.pattern.permute.xlu0 0
    %1890 = vperm.xlu0 %1889, %v1816
    %v1891 = vpop.permute.xlu0 %1890
    %1894 = vset.pattern.permute.xlu0 0
    %1895 = vperm.xlu0 %1894, %v1817
    %v1896 = vpop.permute.xlu0 %1895
    %v1898 = vmul.f32 %v1821, %v956
    %v1899 = vmul.f32 %v1826, %v957
    %v1900 = vmul.f32 %v1831, %v958
    %v1901 = vmul.f32 %v1836, %v959
    %v1902 = vmul.f32 %v1841, %v960
    %v1903 = vmul.f32 %v1846, %v961
    %v1904 = vmul.f32 %v1851, %v962
    %v1905 = vmul.f32 %v1856, %v963
    %v1906 = vmul.f32 %v1861, %v964
    %v1907 = vmul.f32 %v1866, %v965
    %v1908 = vmul.f32 %v1871, %v966
    %v1909 = vmul.f32 %v1876, %v967
    %v1910 = vmul.f32 %v1881, %v968
    %v1911 = vmul.f32 %v1886, %v969
    %v1912 = vmul.f32 %v1891, %v970
    %v1913 = vmul.f32 %v1896, %v971
    %v1914 = vsel %vm121, %v1898, 0.0
    %v1915 = vrot.slane %v1914, 4
    %v1916 = vadd.f32 %v1914, %v1915
    %v1917 = vrot.slane %v1916, 2
    %v1918 = vadd.f32 %v1916, %v1917
    %v1919 = vrot.slane %v1918, 1
    %v1920 = vadd.f32 %v1918, %v1919
    %v1921 = vsel %vm121, %v1899, 0.0
    %v1922 = vrot.slane %v1921, 4
    %v1923 = vadd.f32 %v1921, %v1922
    %v1924 = vrot.slane %v1923, 2
    %v1925 = vadd.f32 %v1923, %v1924
    %v1926 = vrot.slane %v1925, 1
    %v1927 = vadd.f32 %v1925, %v1926
    %v1928 = vsel %vm121, %v1900, 0.0
    %v1929 = vrot.slane %v1928, 4
    %v1930 = vadd.f32 %v1928, %v1929
    %v1931 = vrot.slane %v1930, 2
    %v1932 = vadd.f32 %v1930, %v1931
    %v1933 = vrot.slane %v1932, 1
    %v1934 = vadd.f32 %v1932, %v1933
    %v1935 = vsel %vm121, %v1901, 0.0
    %v1936 = vrot.slane %v1935, 4
    %v1937 = vadd.f32 %v1935, %v1936
    %v1938 = vrot.slane %v1937, 2
    %v1939 = vadd.f32 %v1937, %v1938
    %v1940 = vrot.slane %v1939, 1
    %v1941 = vadd.f32 %v1939, %v1940
    %v1942 = vsel %vm121, %v1902, 0.0
    %v1943 = vrot.slane %v1942, 4
    %v1944 = vadd.f32 %v1942, %v1943
    %v1945 = vrot.slane %v1944, 2
    %v1946 = vadd.f32 %v1944, %v1945
    %v1947 = vrot.slane %v1946, 1
    %v1948 = vadd.f32 %v1946, %v1947
    %v1949 = vsel %vm121, %v1903, 0.0
    %v1950 = vrot.slane %v1949, 4
    %v1951 = vadd.f32 %v1949, %v1950
    %v1952 = vrot.slane %v1951, 2
    %v1953 = vadd.f32 %v1951, %v1952
    %v1954 = vrot.slane %v1953, 1
    %v1955 = vadd.f32 %v1953, %v1954
    %v1956 = vsel %vm121, %v1904, 0.0
    %v1957 = vrot.slane %v1956, 4
    %v1958 = vadd.f32 %v1956, %v1957
    %v1959 = vrot.slane %v1958, 2
    %v1960 = vadd.f32 %v1958, %v1959
    %v1961 = vrot.slane %v1960, 1
    %v1962 = vadd.f32 %v1960, %v1961
    %v1963 = vsel %vm121, %v1905, 0.0
    %v1964 = vrot.slane %v1963, 4
    %v1965 = vadd.f32 %v1963, %v1964
    %v1966 = vrot.slane %v1965, 2
    %v1967 = vadd.f32 %v1965, %v1966
    %v1968 = vrot.slane %v1967, 1
    %v1969 = vadd.f32 %v1967, %v1968
    %v1970 = vsel %vm121, %v1906, 0.0
    %v1971 = vrot.slane %v1970, 4
    %v1972 = vadd.f32 %v1970, %v1971
    %v1973 = vrot.slane %v1972, 2
    %v1974 = vadd.f32 %v1972, %v1973
    %v1975 = vrot.slane %v1974, 1
    %v1976 = vadd.f32 %v1974, %v1975
    %v1977 = vsel %vm121, %v1907, 0.0
    %v1978 = vrot.slane %v1977, 4
    %v1979 = vadd.f32 %v1977, %v1978
    %v1980 = vrot.slane %v1979, 2
    %v1981 = vadd.f32 %v1979, %v1980
    %v1982 = vrot.slane %v1981, 1
    %v1983 = vadd.f32 %v1981, %v1982
    %v1984 = vsel %vm121, %v1908, 0.0
    %v1985 = vrot.slane %v1984, 4
    %v1986 = vadd.f32 %v1984, %v1985
    %v1987 = vrot.slane %v1986, 2
    %v1988 = vadd.f32 %v1986, %v1987
    %v1989 = vrot.slane %v1988, 1
    %v1990 = vadd.f32 %v1988, %v1989
    %v1991 = vsel %vm121, %v1909, 0.0
    %v1992 = vrot.slane %v1991, 4
    %v1993 = vadd.f32 %v1991, %v1992
    %v1994 = vrot.slane %v1993, 2
    %v1995 = vadd.f32 %v1993, %v1994
    %v1996 = vrot.slane %v1995, 1
    %v1997 = vadd.f32 %v1995, %v1996
    %v1998 = vsel %vm121, %v1910, 0.0
    %v1999 = vrot.slane %v1998, 4
    %v2000 = vadd.f32 %v1998, %v1999
    %v2001 = vrot.slane %v2000, 2
    %v2002 = vadd.f32 %v2000, %v2001
    %v2003 = vrot.slane %v2002, 1
    %v2004 = vadd.f32 %v2002, %v2003
    %v2005 = vsel %vm121, %v1911, 0.0
    %v2006 = vrot.slane %v2005, 4
    %v2007 = vadd.f32 %v2005, %v2006
    %v2008 = vrot.slane %v2007, 2
    %v2009 = vadd.f32 %v2007, %v2008
    %v2010 = vrot.slane %v2009, 1
    %v2011 = vadd.f32 %v2009, %v2010
    %v2012 = vsel %vm121, %v1912, 0.0
    %v2013 = vrot.slane %v2012, 4
    %v2014 = vadd.f32 %v2012, %v2013
    %v2015 = vrot.slane %v2014, 2
    %v2016 = vadd.f32 %v2014, %v2015
    %v2017 = vrot.slane %v2016, 1
    %v2018 = vadd.f32 %v2016, %v2017
    %v2019 = vsel %vm121, %v1913, 0.0
    %v2020 = vrot.slane %v2019, 4
    %v2021 = vadd.f32 %v2019, %v2020
    %v2022 = vrot.slane %v2021, 2
    %v2023 = vadd.f32 %v2021, %v2022
    %v2024 = vrot.slane %v2023, 1
    %v2025 = vadd.f32 %v2023, %v2024
    %v2026 = vtanh.pop %v1920
    %v2027 = vtanh.pop %v1927
    %v2028 = vtanh.pop %v1934
    %v2029 = vtanh.pop %v1941
    %v2030 = vtanh.pop %v1948
    %v2031 = vtanh.pop %v1955
    %v2032 = vtanh.pop %v1962
    %v2033 = vtanh.pop %v1969
    %v2034 = vtanh.pop %v1976
    %v2035 = vtanh.pop %v1983
    %v2036 = vtanh.pop %v1990
    %v2037 = vtanh.pop %v1997
    %v2038 = vtanh.pop %v2004
    %v2039 = vtanh.pop %v2011
    %v2040 = vtanh.pop %v2018
    %v2041 = vtanh.pop %v2025
    %v2042 = vtanh.pop %v2026
    %v2043 = vtanh.pop %v2027
    %v2044 = vtanh.pop %v2028
    %v2045 = vtanh.pop %v2029
    %v2046 = vtanh.pop %v2030
    %v2047 = vtanh.pop %v2031
    %v2048 = vtanh.pop %v2032
    %v2049 = vtanh.pop %v2033
    %v2050 = vtanh.pop %v2034
    %v2051 = vtanh.pop %v2035
    %v2052 = vtanh.pop %v2036
    %v2053 = vtanh.pop %v2037
    %v2054 = vtanh.pop %v2038
    %v2055 = vtanh.pop %v2039
    %v2056 = vtanh.pop %v2040
    %v2057 = vtanh.pop %v2041
    %vm2066 = vcmask 1041409
    %v2067 = vsel %vm2066, %v949, %v948
    %vm2068 = vcmask 1042434
    %v2069 = vsel %vm2068, %v950, %v2067
    %vm2070 = vcmask 1043459
    %v2071 = vsel %vm2070, %v951, %v2069
    %vm2072 = vcmask 1044484
    %v2073 = vsel %vm2072, %v952, %v2071
    %vm2074 = vcmask 1045509
    %v2075 = vsel %vm2074, %v953, %v2073
    %vm2076 = vcmask 1046534
    %v2077 = vsel %vm2076, %v954, %v2075
    %vm2078 = vcmask 1047559
    %v2079 = vsel %vm2078, %v955, %v2077
    %2081 = vst.msk [vmem:[#allocation11] sm:$0xff] %vm121, %v2079
    %v2098 = vsel %vm2066, %v2043, %v2042
    %v2099 = vsel %vm2068, %v2044, %v2098
    %v2100 = vsel %vm2070, %v2045, %v2099
    %v2101 = vsel %vm2072, %v2046, %v2100
    %v2102 = vsel %vm2074, %v2047, %v2101
    %v2103 = vsel %vm2076, %v2048, %v2102
    %v2104 = vsel %vm2078, %v2049, %v2103
    %v2105 = vsel %vm2066, %v2051, %v2050
    %v2106 = vsel %vm2068, %v2052, %v2105
    %v2107 = vsel %vm2070, %v2053, %v2106
    %v2108 = vsel %vm2072, %v2054, %v2107
    %v2109 = vsel %vm2074, %v2055, %v2108
    %v2110 = vsel %vm2076, %v2056, %v2109
    %v2111 = vsel %vm2078, %v2057, %v2110
    %2114 = vst.msk [vmem:[#allocation13] sm:$0xff] %vm121, %v2104
    %2115 = vst.msk [vmem:[#allocation13 + $0x8] sm:$0xff] %vm121, %v2111
    %v2116 = vmul.f32 %v948, %v2042
    %v2117 = vmul.f32 %v949, %v2043
    %v2118 = vmul.f32 %v950, %v2044
    %v2119 = vmul.f32 %v951, %v2045
    %v2120 = vmul.f32 %v952, %v2046
    %v2121 = vmul.f32 %v953, %v2047
    %v2122 = vmul.f32 %v954, %v2048
    %v2123 = vmul.f32 %v955, %v2049
    %v2132 = vsel %vm2066, %v2117, %v2116
    %v2133 = vsel %vm2068, %v2118, %v2132
    %v2134 = vsel %vm2070, %v2119, %v2133
    %v2135 = vsel %vm2072, %v2120, %v2134
    %v2136 = vsel %vm2074, %v2121, %v2135
    %v2137 = vsel %vm2076, %v2122, %v2136
    %v2138 = vsel %vm2078, %v2123, %v2137
    %v2140 = vsel %vm121, %v2138, 0.0
    %2141 = vadd.xlane.f32.xlu0 %v2140
    %v2142 = vpop.xlane.xlu0 %2141
    %v2143 = vmul.f32 %v948, %v948
    %v2144 = vmul.f32 %v949, %v949
    %v2145 = vmul.f32 %v950, %v950
    %v2146 = vmul.f32 %v951, %v951
    %v2147 = vmul.f32 %v952, %v952
    %v2148 = vmul.f32 %v953, %v953
    %v2149 = vmul.f32 %v954, %v954
    %v2150 = vmul.f32 %v955, %v955
    %v2159 = vsel %vm2066, %v2144, %v2143
    %v2160 = vsel %vm2068, %v2145, %v2159
    %v2161 = vsel %vm2070, %v2146, %v2160
    %v2162 = vsel %vm2072, %v2147, %v2161
    %v2163 = vsel %vm2074, %v2148, %v2162
    %v2164 = vsel %vm2076, %v2149, %v2163
    %v2165 = vsel %vm2078, %v2150, %v2164
    %v2167 = vsel %vm121, %v2165, 0.0
    %2168 = vadd.xlane.f32.xlu0 %v2167
    %v2169 = vpop.xlane.xlu0 %2168
    %v2170 = vmul.f32 %v2042, %v2042
    %v2171 = vmul.f32 %v2043, %v2043
    %v2172 = vmul.f32 %v2044, %v2044
    %v2173 = vmul.f32 %v2045, %v2045
    %v2174 = vmul.f32 %v2046, %v2046
    %v2175 = vmul.f32 %v2047, %v2047
    %v2176 = vmul.f32 %v2048, %v2048
    %v2177 = vmul.f32 %v2049, %v2049
    %v2186 = vsel %vm2066, %v2171, %v2170
    %v2187 = vsel %vm2068, %v2172, %v2186
    %v2188 = vsel %vm2070, %v2173, %v2187
    %v2189 = vsel %vm2072, %v2174, %v2188
    %v2190 = vsel %vm2074, %v2175, %v2189
    %v2191 = vsel %vm2076, %v2176, %v2190
    %v2192 = vsel %vm2078, %v2177, %v2191
    %v2194 = vsel %vm121, %v2192, 0.0
    %2195 = vadd.xlane.f32.xlu0 %v2194
    %v2196 = vpop.xlane.xlu0 %2195
    %v2197 = vmul.f32 %v2169, %v2196
    %v2198 = vmax.f32 %v2197, 1e-16
    %v2199 = vrsqrt.pop %v2198
    %v2200 = vmul.f32 %v2142, %v2199
    %v2201 = vmul.f32 %v948, %v2050
    %v2202 = vmul.f32 %v949, %v2051
    %v2203 = vmul.f32 %v950, %v2052
    %v2204 = vmul.f32 %v951, %v2053
    %v2205 = vmul.f32 %v952, %v2054
    %v2206 = vmul.f32 %v953, %v2055
    %v2207 = vmul.f32 %v954, %v2056
    %v2208 = vmul.f32 %v955, %v2057
    %v2217 = vsel %vm2066, %v2202, %v2201
    %v2218 = vsel %vm2068, %v2203, %v2217
    %v2219 = vsel %vm2070, %v2204, %v2218
    %v2220 = vsel %vm2072, %v2205, %v2219
    %v2221 = vsel %vm2074, %v2206, %v2220
    %v2222 = vsel %vm2076, %v2207, %v2221
    %v2223 = vsel %vm2078, %v2208, %v2222
    %v2225 = vsel %vm121, %v2223, 0.0
    %2226 = vadd.xlane.f32.xlu0 %v2225
    %v2227 = vpop.xlane.xlu0 %2226
    %v2228 = vmul.f32 %v2050, %v2050
    %v2229 = vmul.f32 %v2051, %v2051
    %v2230 = vmul.f32 %v2052, %v2052
    %v2231 = vmul.f32 %v2053, %v2053
    %v2232 = vmul.f32 %v2054, %v2054
    %v2233 = vmul.f32 %v2055, %v2055
    %v2234 = vmul.f32 %v2056, %v2056
    %v2235 = vmul.f32 %v2057, %v2057
    %v2244 = vsel %vm2066, %v2229, %v2228
    %v2245 = vsel %vm2068, %v2230, %v2244
    %v2246 = vsel %vm2070, %v2231, %v2245
    %v2247 = vsel %vm2072, %v2232, %v2246
    %v2248 = vsel %vm2074, %v2233, %v2247
    %v2249 = vsel %vm2076, %v2234, %v2248
    %v2250 = vsel %vm2078, %v2235, %v2249
    %v2252 = vsel %vm121, %v2250, 0.0
    %2253 = vadd.xlane.f32.xlu0 %v2252
    %v2254 = vpop.xlane.xlu0 %2253
    %v2255 = vmul.f32 %v2169, %v2254
    %v2256 = vmax.f32 %v2255, 1e-16
    %v2257 = vrsqrt.pop %v2256
    %v2258 = vmul.f32 %v2227, %v2257
    %v2259 = vsub.f32 0.6, %v2200
    %v2260 = vadd.f32 %v2259, %v2258
    %v2261 = vmax.f32 %v2260, 1e-06
    %v2262 = vrot.slane %v2261, 4
    %v2263 = vadd.f32 %v2261, %v2262
    %v2264 = vrot.slane %v2263, 2
    %v2265 = vadd.f32 %v2263, %v2264
    %v2266 = vrot.slane %v2265, 1
    %v2267 = vadd.f32 %v2265, %v2266
    %v2268 = vmul.f32 %v2267, 0.125
    %vm2269 = vcmask 0
    %2270 = vst.msk [vmem:[#allocation10] sm:$0x1] %vm2269, %v2268
    // Predicated region
    $region62: #{tpu_custom_call.1} parent=1 // pred_check
      _
    $region63: #{tpu_custom_call.1} parent=1 // pred_check_branch
      %2272 = sbr.rel (0) target = $region65
    $region64: #{tpu_custom_call.1} parent=1 // pred_region
      %s2274 = ssub.s32 16, 16
      %2275 = vsyncadd [#allocation6], %s2274
      %s2277 = sshll.u32 [#allocation10], 4
      %s2278 = int_to_ptr.vmem [resolvable:$true] %s2277
      %2280 = dma.vmem_to_hbm [thread:$0]  %s2278, 16, %s12, [#allocation6]
    $region65: #{tpu_custom_call.1} parent=1 // pred_fallthru
      _
    // Predicated region
    $region66: #{tpu_custom_call.1} parent=1 // pred_check
      _
    $region67: #{tpu_custom_call.1} parent=1 // pred_check_branch
      %2282 = sbr.rel (0) target = $region69
    $region68: #{tpu_custom_call.1} parent=1 // pred_region
      %s2284 = ssub.s32 128, 128
      %2285 = vsyncadd [#allocation12], %s2284
      %s2287 = sshll.u32 [#allocation11], 4
      %s2288 = int_to_ptr.vmem [resolvable:$true] %s2287
      %2290 = dma.vmem_to_hbm [thread:$0]  %s2288, 128, %s13, [#allocation12]
    $region69: #{tpu_custom_call.1} parent=1 // pred_fallthru
      _
    // Predicated region
    $region70: #{tpu_custom_call.1} parent=1 // pred_check
      _
    $region71: #{tpu_custom_call.1} parent=1 // pred_check_branch
      %2292 = sbr.rel (0) target = $region73
    $region72: #{tpu_custom_call.1} parent=1 // pred_region
      %s2294 = ssub.s32 256, 256
      %2295 = vsyncadd [#allocation12], %s2294
      %s2296 = sshll.u32 [#allocation13], 4
      %s2297 = int_to_ptr.vmem [resolvable:$true] %s2296
      %2302 = dma.vmem_to_hbm [thread:$0]  %s2297, 256, %s14, [#allocation12], 128, 128, 8
    $region73: #{tpu_custom_call.1} parent=1 // pred_fallthru
      _
    // Predicated region
    $region74: #{tpu_custom_call.1} parent=1 // pred_check
      _
    $region75: #{tpu_custom_call.1} parent=1 // pred_check_branch
      %2304 = sbr.rel (0) target = $region77
    $region76: #{tpu_custom_call.1} parent=1 // pred_region
      %2305 = dma.done [#allocation6], 16
    $region77: #{tpu_custom_call.1} parent=1 // pred_fallthru
      _
    // Predicated region
    $region78: #{tpu_custom_call.1} parent=1 // pred_check
      _
    $region79: #{tpu_custom_call.1} parent=1 // pred_check_branch
      %2307 = sbr.rel (0) target = $region81
    $region80: #{tpu_custom_call.1} parent=1 // pred_region
      %2308 = dma.done [#allocation12], 128
    $region81: #{tpu_custom_call.1} parent=1 // pred_fallthru
      _
    // Predicated region
    $region82: #{tpu_custom_call.1} parent=1 // pred_check
      _
    $region83: #{tpu_custom_call.1} parent=1 // pred_check_branch
      %2310 = sbr.rel (0) target = $region85
    $region84: #{tpu_custom_call.1} parent=1 // pred_region
      %2311 = dma.done [#allocation12], 256
    $region85: #{tpu_custom_call.1} parent=1 // pred_fallthru
      _
    %2312 = vsyncpa [#allocation5], 1
    %2313 = vsyncpa [#allocation8], 1
    %2314 = vsyncpa [#allocation6], 1
    %2315 = vsyncpa [#allocation12], 1

</llo_original>
